<compile_context>
chip_gen: v7x
topology: tpu7x:2x2x1
jax: 0.10.0
libtpu: 0.0.40
codegen_flags: <defaults>
</compile_context>

<pallas_src>
import jax
import jax.numpy as jnp
from jax.experimental import pallas as pl
from jax.experimental.pallas import tpu as pltpu

# Small, TPU-friendly stand-ins for the module's data-dependent sizes.
# (The original uses INPUT_DIM=len(attributes), OUTPUT_DIM=len(items),
#  HIDDEN_DIM=2000; here we pick small multiples of 128 for the lane dim.)
INPUT_DIM = 128    # NUM_ATTRIBUTES
OUTPUT_DIM = 128   # NUM_ITEMS   (latent dim of the VAE)
HIDDEN_DIM = 256
TM = 128           # batch tile (rows per grid step)
BATCH = 256


def _vae_kernel(x_ref, eps_ref,
                w1_ref, b1_ref, wh_ref, bh_ref,
                w3_ref, b3_ref, w4_ref, b4_ref,
                recon_ref, mu_ref, logvar_ref):
    x = x_ref[...]        # (TM, INPUT_DIM) f32
    eps = eps_ref[...]    # (TM, OUTPUT_DIM) f32

    # ---- encode: h1 = relu(x @ W1 + b1) ----
    h1 = jnp.dot(x.astype(jnp.bfloat16), w1_ref[...],
                 preferred_element_type=jnp.float32) + b1_ref[...]
    h1 = jnp.maximum(h1, 0.0)

    # ---- fused fc21 / fc22 head: one (HIDDEN, 2*OUT) matmul ----
    head = jnp.dot(h1.astype(jnp.bfloat16), wh_ref[...],
                   preferred_element_type=jnp.float32) + bh_ref[...]
    mu = head[:, :OUTPUT_DIM]        # lane-aligned slice (128 boundary)
    logvar = head[:, OUTPUT_DIM:]

    # ---- reparameterize: z = mu + eps * exp(0.5 * logvar) ----
    z = mu + eps * jnp.exp(0.5 * logvar)

    # ---- decode: recon = sigmoid(relu(z @ W3 + b3) @ W4 + b4) ----
    h3 = jnp.dot(z.astype(jnp.bfloat16), w3_ref[...],
                 preferred_element_type=jnp.float32) + b3_ref[...]
    h3 = jnp.maximum(h3, 0.0)
    logits = jnp.dot(h3.astype(jnp.bfloat16), w4_ref[...],
                     preferred_element_type=jnp.float32) + b4_ref[...]
    recon = jax.nn.sigmoid(logits)   # EUP path

    recon_ref[...] = recon
    mu_ref[...] = mu
    logvar_ref[...] = logvar


@jax.jit
def vae_forward(x, params, eps):
    """x: (B, INPUT_DIM) f32, eps: (B, OUTPUT_DIM) f32 -> (recon, mu, logvar)."""
    B = x.shape[0]
    n_tiles = -(-B // TM)
    Bp = n_tiles * TM
    if Bp != B:  # pad batch so every tile is full and stores stay lane-dense
        x = jnp.pad(x, ((0, Bp - B), (0, 0)))
        eps = jnp.pad(eps, ((0, Bp - B), (0, 0)))

    # Batch-tiled blocks for activations / outputs.
    def row_spec(feat):
        return pl.BlockSpec((TM, feat), lambda i: (i, 0))

    # Weights / biases: constant index_map -> block stays resident across the
    # batch grid (no re-DMA per step).
    # TODO(synk): at the real HIDDEN_DIM=2000 / vocab-sized dims, tile the
    # feature axes (or keep big weights in HBM with manual DMA) and set
    # pipeline_mode=pl.Buffered(1) on the invariant weight blocks so they fit
    # under v7x's 64 MiB VMEM.
    def const_spec(shape):
        return pl.BlockSpec(shape, lambda i: (0, 0))

    in_specs = [
        row_spec(INPUT_DIM),                      # x
        row_spec(OUTPUT_DIM),                     # eps
        const_spec((INPUT_DIM, HIDDEN_DIM)),      # w1  (bf16)
        const_spec((1, HIDDEN_DIM)),              # b1
        const_spec((HIDDEN_DIM, 2 * OUTPUT_DIM)), # wh = [w21 | w22] (bf16)
        const_spec((1, 2 * OUTPUT_DIM)),          # bh = [b21 | b22]
        const_spec((OUTPUT_DIM, HIDDEN_DIM)),     # w3  (bf16)
        const_spec((1, HIDDEN_DIM)),              # b3
        const_spec((HIDDEN_DIM, INPUT_DIM)),      # w4  (bf16)
        const_spec((1, INPUT_DIM)),               # b4
    ]
    out_specs = (row_spec(INPUT_DIM), row_spec(OUTPUT_DIM), row_spec(OUTPUT_DIM))
    out_shapes = (
        jax.ShapeDtypeStruct((Bp, INPUT_DIM), jnp.float32),   # recon
        jax.ShapeDtypeStruct((Bp, OUTPUT_DIM), jnp.float32),  # mu
        jax.ShapeDtypeStruct((Bp, OUTPUT_DIM), jnp.float32),  # logvar
    )

    flops = 2 * Bp * (INPUT_DIM * HIDDEN_DIM
                      + HIDDEN_DIM * 2 * OUTPUT_DIM
                      + OUTPUT_DIM * HIDDEN_DIM
                      + HIDDEN_DIM * INPUT_DIM)
    transcendentals = Bp * (OUTPUT_DIM + INPUT_DIM)
    weight_bytes = 2 * (INPUT_DIM * HIDDEN_DIM + HIDDEN_DIM * 2 * OUTPUT_DIM
                        + OUTPUT_DIM * HIDDEN_DIM + HIDDEN_DIM * INPUT_DIM)
    bias_bytes = 4 * (HIDDEN_DIM + 2 * OUTPUT_DIM + HIDDEN_DIM + INPUT_DIM)
    io_bytes = 4 * Bp * (INPUT_DIM + OUTPUT_DIM)            # x + eps
    out_bytes = 4 * Bp * (INPUT_DIM + 2 * OUTPUT_DIM)       # recon + mu + logvar
    cost = pl.CostEstimate(flops=flops, transcendentals=transcendentals,
                           bytes_accessed=weight_bytes + bias_bytes + io_bytes + out_bytes)

    recon, mu, logvar = pl.pallas_call(
        _vae_kernel,
        out_shape=out_shapes,
        grid_spec=pltpu.PrefetchScalarGridSpec(
            num_scalar_prefetch=0,
            grid=(n_tiles,),
            in_specs=in_specs,
            out_specs=out_specs,
        ),
        compiler_params=pltpu.CompilerParams(
            dimension_semantics=("parallel",),
        ),
        cost_estimate=cost,
    )(x, eps,
      params["w1"], params["b1"], params["wh"], params["bh"],
      params["w3"], params["b3"], params["w4"], params["b4"])

    return recon[:B], mu[:B], logvar[:B]


def init_params(key):
    """Init mimicking torch.nn.Linear defaults (uniform +/- 1/sqrt(fan_in)).

    Weights are pre-transposed to (in_features, out_features) and stored in
    bf16; the fc21/fc22 head is fused into wh = [w21 | w22], bh = [b21 | b22].
    Biases stay f32 (they are added to the f32 MXU accumulator).
    """
    def linear(key, fan_in, fan_out):
        kw, kb = jax.random.split(key)
        bound = 1.0 / jnp.sqrt(float(fan_in))
        w = jax.random.uniform(kw, (fan_in, fan_out), jnp.float32, -bound, bound)
        b = jax.random.uniform(kb, (1, fan_out), jnp.float32, -bound, bound)
        return w, b

    k1, k21, k22, k3, k4 = jax.random.split(key, 5)
    w1, b1 = linear(k1, INPUT_DIM, HIDDEN_DIM)      # fc1
    w21, b21 = linear(k21, HIDDEN_DIM, OUTPUT_DIM)  # fc21
    w22, b22 = linear(k22, HIDDEN_DIM, OUTPUT_DIM)  # fc22
    w3, b3 = linear(k3, OUTPUT_DIM, HIDDEN_DIM)     # fc3
    w4, b4 = linear(k4, HIDDEN_DIM, INPUT_DIM)      # fc4

    wh = jnp.concatenate([w21, w22], axis=1)        # (HIDDEN, 2*OUT)
    bh = jnp.concatenate([b21, b22], axis=1)        # (1, 2*OUT)

    bf16 = jnp.bfloat16
    return dict(w1=w1.astype(bf16), b1=b1,
                wh=wh.astype(bf16), bh=bh,
                w3=w3.astype(bf16), b3=b3,
                w4=w4.astype(bf16), b4=b4)


def vae_forward_ref(x, params, eps):
    """Pure-JAX reference with the same bf16-weight numerics as the kernel."""
    bf16 = jnp.bfloat16
    h1 = jax.nn.relu(
        jnp.dot(x.astype(bf16), params["w1"], preferred_element_type=jnp.float32)
        + params["b1"])
    head = jnp.dot(h1.astype(bf16), params["wh"],
                   preferred_element_type=jnp.float32) + params["bh"]
    mu, logvar = head[:, :OUTPUT_DIM], head[:, OUTPUT_DIM:]
    z = mu + eps * jnp.exp(0.5 * logvar)
    h3 = jax.nn.relu(
        jnp.dot(z.astype(bf16), params["w3"], preferred_element_type=jnp.float32)
        + params["b3"])
    recon = jax.nn.sigmoid(
        jnp.dot(h3.astype(bf16), params["w4"], preferred_element_type=jnp.float32)
        + params["b4"])
    return recon, mu, logvar


if __name__ == "__main__":
    key = jax.random.PRNGKey(0)
    kx, keps, kp = jax.random.split(key, 3)

    # x.view(-1, INPUT_DIM) in the original -> built already flattened.
    x = jax.random.normal(kx, (BATCH, INPUT_DIM), jnp.float32)
    # eps corresponds to torch.randn_like(std); generated deterministically here.
    eps = jax.random.normal(keps, (BATCH, OUTPUT_DIM), jnp.float32)
    params = init_params(kp)

    recon, mu, logvar = vae_forward(x, params, eps)
    jax.block_until_ready((recon, mu, logvar))

    # sanity check against a pure-JAX reference (same bf16 weight numerics)
    r_ref, mu_ref, lv_ref = vae_forward_ref(x, params, eps)
    assert jnp.allclose(recon, r_ref, atol=2e-3, rtol=2e-3), "recon mismatch"
    assert jnp.allclose(mu, mu_ref, atol=2e-3, rtol=2e-3), "mu mismatch"
    assert jnp.allclose(logvar, lv_ref, atol=2e-3, rtol=2e-3), "logvar mismatch"

    print("KERNEL_OK")
</pallas_src>

<mosaic_0001>
module attributes {stable_mosaic.version = 11 : i64} {
  func.func @_vae_kernel(%arg0: i32, %arg1: memref<128x128xf32, #tpu.memory_space<vmem>>, %arg2: memref<128x128xf32, #tpu.memory_space<vmem>>, %arg3: memref<128x256xbf16, #tpu.memory_space<vmem>>, %arg4: memref<1x256xf32, #tpu.memory_space<vmem>>, %arg5: memref<256x256xbf16, #tpu.memory_space<vmem>>, %arg6: memref<1x256xf32, #tpu.memory_space<vmem>>, %arg7: memref<128x256xbf16, #tpu.memory_space<vmem>>, %arg8: memref<1x256xf32, #tpu.memory_space<vmem>>, %arg9: memref<256x128xbf16, #tpu.memory_space<vmem>>, %arg10: memref<1x128xf32, #tpu.memory_space<vmem>>, %arg11: memref<128x128xf32, #tpu.memory_space<vmem>>, %arg12: memref<128x128xf32, #tpu.memory_space<vmem>>, %arg13: memref<128x128xf32, #tpu.memory_space<vmem>>) attributes {dimension_semantics = [#tpu.dimension_semantics<parallel>], iteration_bounds = array<i64: 2>, scalar_prefetch = 0 : i64, scratch_operands = 0 : i64, tpu.core_type = #tpu.core_type<tc>, window_params = [{transform_indices = @transform_0, window_bounds = array<i64: 128, 128>}, {transform_indices = @transform_1, window_bounds = array<i64: 128, 128>}, {pipeline_mode = #tpu.pipeline_mode<synchronous>, transform_indices = @transform_2, window_bounds = array<i64: 128, 256>}, {pipeline_mode = #tpu.pipeline_mode<synchronous>, transform_indices = @transform_3, window_bounds = array<i64: 1, 256>}, {pipeline_mode = #tpu.pipeline_mode<synchronous>, transform_indices = @transform_4, window_bounds = array<i64: 256, 256>}, {pipeline_mode = #tpu.pipeline_mode<synchronous>, transform_indices = @transform_5, window_bounds = array<i64: 1, 256>}, {pipeline_mode = #tpu.pipeline_mode<synchronous>, transform_indices = @transform_6, window_bounds = array<i64: 128, 256>}, {pipeline_mode = #tpu.pipeline_mode<synchronous>, transform_indices = @transform_7, window_bounds = array<i64: 1, 256>}, {pipeline_mode = #tpu.pipeline_mode<synchronous>, transform_indices = @transform_8, window_bounds = array<i64: 256, 128>}, {pipeline_mode = #tpu.pipeline_mode<synchronous>, transform_indices = @transform_9, window_bounds = array<i64: 1, 128>}, {transform_indices = @transform_10, window_bounds = array<i64: 128, 128>}, {transform_indices = @transform_11, window_bounds = array<i64: 128, 128>}, {transform_indices = @transform_12, window_bounds = array<i64: 128, 128>}]} {
    %c0 = arith.constant 0 : index
    %c0_0 = arith.constant 0 : index
    %0 = vector.load %arg1[%c0, %c0_0] : memref<128x128xf32, #tpu.memory_space<vmem>>, vector<128x128xf32>
    %c0_1 = arith.constant 0 : index
    %c0_2 = arith.constant 0 : index
    %1 = vector.load %arg2[%c0_1, %c0_2] : memref<128x128xf32, #tpu.memory_space<vmem>>, vector<128x128xf32>
    %2 = arith.truncf %0 : vector<128x128xf32> to vector<128x128xbf16>
    %c0_3 = arith.constant 0 : index
    %c0_4 = arith.constant 0 : index
    %3 = vector.load %arg3[%c0_3, %c0_4] : memref<128x256xbf16, #tpu.memory_space<vmem>>, vector<128x256xbf16>
    %cst = arith.constant dense<0.000000e+00> : vector<128x256xf32>
    %4 = tpu.matmul %2, %3, %cst {dimension_numbers = #tpu.dot_dimension_numbers<[1], [0], [0], [1], [0, 0, 1, 1], [], []>} : vector<128x128xbf16>, vector<128x256xbf16>, vector<128x256xf32> -> vector<128x256xf32>
    %c0_5 = arith.constant 0 : index
    %c0_6 = arith.constant 0 : index
    %5 = vector.load %arg4[%c0_5, %c0_6] : memref<1x256xf32, #tpu.memory_space<vmem>>, vector<1x256xf32>
    %6 = vector.broadcast %5 : vector<1x256xf32> to vector<128x256xf32>
    %7 = arith.addf %4, %6 : vector<128x256xf32>
    %cst_7 = arith.constant 0.000000e+00 : f32
    %8 = vector.broadcast %cst_7 : f32 to vector<128x256xf32>
    %9 = arith.maximumf %7, %8 : vector<128x256xf32>
    %10 = arith.truncf %9 : vector<128x256xf32> to vector<128x256xbf16>
    %c0_8 = arith.constant 0 : index
    %c0_9 = arith.constant 0 : index
    %11 = vector.load %arg5[%c0_8, %c0_9] : memref<256x256xbf16, #tpu.memory_space<vmem>>, vector<256x256xbf16>
    %cst_10 = arith.constant dense<0.000000e+00> : vector<128x256xf32>
    %12 = tpu.matmul %10, %11, %cst_10 {dimension_numbers = #tpu.dot_dimension_numbers<[1], [0], [0], [1], [0, 0, 1, 1], [], []>} : vector<128x256xbf16>, vector<256x256xbf16>, vector<128x256xf32> -> vector<128x256xf32>
    %c0_11 = arith.constant 0 : index
    %c0_12 = arith.constant 0 : index
    %13 = vector.load %arg6[%c0_11, %c0_12] : memref<1x256xf32, #tpu.memory_space<vmem>>, vector<1x256xf32>
    %14 = vector.broadcast %13 : vector<1x256xf32> to vector<128x256xf32>
    %15 = arith.addf %12, %14 : vector<128x256xf32>
    %16 = vector.extract_strided_slice %15 {offsets = [0, 0], sizes = [128, 128], strides = [1, 1]} : vector<128x256xf32> to vector<128x128xf32>
    %17 = vector.extract_strided_slice %15 {offsets = [0, 128], sizes = [128, 128], strides = [1, 1]} : vector<128x256xf32> to vector<128x128xf32>
    %cst_13 = arith.constant 5.000000e-01 : f32
    %18 = vector.broadcast %cst_13 : f32 to vector<128x128xf32>
    %19 = arith.mulf %18, %17 : vector<128x128xf32>
    %20 = math.exp %19 : vector<128x128xf32>
    %21 = arith.mulf %1, %20 : vector<128x128xf32>
    %22 = arith.addf %16, %21 : vector<128x128xf32>
    %23 = arith.truncf %22 : vector<128x128xf32> to vector<128x128xbf16>
    %c0_14 = arith.constant 0 : index
    %c0_15 = arith.constant 0 : index
    %24 = vector.load %arg7[%c0_14, %c0_15] : memref<128x256xbf16, #tpu.memory_space<vmem>>, vector<128x256xbf16>
    %cst_16 = arith.constant dense<0.000000e+00> : vector<128x256xf32>
    %25 = tpu.matmul %23, %24, %cst_16 {dimension_numbers = #tpu.dot_dimension_numbers<[1], [0], [0], [1], [0, 0, 1, 1], [], []>} : vector<128x128xbf16>, vector<128x256xbf16>, vector<128x256xf32> -> vector<128x256xf32>
    %c0_17 = arith.constant 0 : index
    %c0_18 = arith.constant 0 : index
    %26 = vector.load %arg8[%c0_17, %c0_18] : memref<1x256xf32, #tpu.memory_space<vmem>>, vector<1x256xf32>
    %27 = vector.broadcast %26 : vector<1x256xf32> to vector<128x256xf32>
    %28 = arith.addf %25, %27 : vector<128x256xf32>
    %cst_19 = arith.constant 0.000000e+00 : f32
    %29 = vector.broadcast %cst_19 : f32 to vector<128x256xf32>
    %30 = arith.maximumf %28, %29 : vector<128x256xf32>
    %31 = arith.truncf %30 : vector<128x256xf32> to vector<128x256xbf16>
    %c0_20 = arith.constant 0 : index
    %c0_21 = arith.constant 0 : index
    %32 = vector.load %arg9[%c0_20, %c0_21] : memref<256x128xbf16, #tpu.memory_space<vmem>>, vector<256x128xbf16>
    %cst_22 = arith.constant dense<0.000000e+00> : vector<128x128xf32>
    %33 = tpu.matmul %31, %32, %cst_22 {dimension_numbers = #tpu.dot_dimension_numbers<[1], [0], [0], [1], [0, 0, 1, 1], [], []>} : vector<128x256xbf16>, vector<256x128xbf16>, vector<128x128xf32> -> vector<128x128xf32>
    %c0_23 = arith.constant 0 : index
    %c0_24 = arith.constant 0 : index
    %34 = vector.load %arg10[%c0_23, %c0_24] : memref<1x128xf32, #tpu.memory_space<vmem>>, vector<1x128xf32>
    %35 = vector.broadcast %34 : vector<1x128xf32> to vector<128x128xf32>
    %36 = arith.addf %33, %35 : vector<128x128xf32>
    %37 = arith.negf %36 : vector<128x128xf32>
    %38 = math.exp %37 : vector<128x128xf32>
    %cst_25 = arith.constant 1.000000e+00 : f32
    %39 = vector.broadcast %cst_25 : f32 to vector<128x128xf32>
    %40 = arith.addf %39, %38 : vector<128x128xf32>
    %41 = arith.divf %39, %40 : vector<128x128xf32>
    %c0_26 = arith.constant 0 : index
    %c0_27 = arith.constant 0 : index
    %42 = vector.load %arg11[%c0_26, %c0_27] : memref<128x128xf32, #tpu.memory_space<vmem>>, vector<128x128xf32>
    tpu.vector_store %arg11[%c0_26, %c0_27], %41 {strides = array<i32>} : memref<128x128xf32, #tpu.memory_space<vmem>>, vector<128x128xf32>,
    %c0_28 = arith.constant 0 : index
    %c0_29 = arith.constant 0 : index
    %43 = vector.load %arg12[%c0_28, %c0_29] : memref<128x128xf32, #tpu.memory_space<vmem>>, vector<128x128xf32>
    tpu.vector_store %arg12[%c0_28, %c0_29], %16 {strides = array<i32>} : memref<128x128xf32, #tpu.memory_space<vmem>>, vector<128x128xf32>,
    %c0_30 = arith.constant 0 : index
    %c0_31 = arith.constant 0 : index
    %44 = vector.load %arg13[%c0_30, %c0_31] : memref<128x128xf32, #tpu.memory_space<vmem>>, vector<128x128xf32>
    tpu.vector_store %arg13[%c0_30, %c0_31], %17 {strides = array<i32>} : memref<128x128xf32, #tpu.memory_space<vmem>>, vector<128x128xf32>,
    return
  }
  func.func @transform_0(%arg0: i32) -> (i32, i32) {
    %c0_i32 = arith.constant 0 : i32
    %c0_i32_0 = arith.constant 0 : i32
    return %arg0, %c0_i32 : i32, i32
  }
  func.func @transform_1(%arg0: i32) -> (i32, i32) {
    %c0_i32 = arith.constant 0 : i32
    %c0_i32_0 = arith.constant 0 : i32
    return %arg0, %c0_i32 : i32, i32
  }
  func.func @transform_2(%arg0: i32) -> (i32, i32) {
    %c0_i32 = arith.constant 0 : i32
    %c0_i32_0 = arith.constant 0 : i32
    %c0_i32_1 = arith.constant 0 : i32
    return %c0_i32, %c0_i32_0 : i32, i32
  }
  func.func @transform_3(%arg0: i32) -> (i32, i32) {
    %c0_i32 = arith.constant 0 : i32
    %c0_i32_0 = arith.constant 0 : i32
    %c0_i32_1 = arith.constant 0 : i32
    return %c0_i32, %c0_i32_0 : i32, i32
  }
  func.func @transform_4(%arg0: i32) -> (i32, i32) {
    %c0_i32 = arith.constant 0 : i32
    %c0_i32_0 = arith.constant 0 : i32
    %c0_i32_1 = arith.constant 0 : i32
    return %c0_i32, %c0_i32_0 : i32, i32
  }
  func.func @transform_5(%arg0: i32) -> (i32, i32) {
    %c0_i32 = arith.constant 0 : i32
    %c0_i32_0 = arith.constant 0 : i32
    %c0_i32_1 = arith.constant 0 : i32
    return %c0_i32, %c0_i32_0 : i32, i32
  }
  func.func @transform_6(%arg0: i32) -> (i32, i32) {
    %c0_i32 = arith.constant 0 : i32
    %c0_i32_0 = arith.constant 0 : i32
    %c0_i32_1 = arith.constant 0 : i32
    return %c0_i32, %c0_i32_0 : i32, i32
  }
  func.func @transform_7(%arg0: i32) -> (i32, i32) {
    %c0_i32 = arith.constant 0 : i32
    %c0_i32_0 = arith.constant 0 : i32
    %c0_i32_1 = arith.constant 0 : i32
    return %c0_i32, %c0_i32_0 : i32, i32
  }
  func.func @transform_8(%arg0: i32) -> (i32, i32) {
    %c0_i32 = arith.constant 0 : i32
    %c0_i32_0 = arith.constant 0 : i32
    %c0_i32_1 = arith.constant 0 : i32
    return %c0_i32, %c0_i32_0 : i32, i32
  }
  func.func @transform_9(%arg0: i32) -> (i32, i32) {
    %c0_i32 = arith.constant 0 : i32
    %c0_i32_0 = arith.constant 0 : i32
    %c0_i32_1 = arith.constant 0 : i32
    return %c0_i32, %c0_i32_0 : i32, i32
  }
  func.func @transform_10(%arg0: i32) -> (i32, i32) {
    %c0_i32 = arith.constant 0 : i32
    %c0_i32_0 = arith.constant 0 : i32
    return %arg0, %c0_i32 : i32, i32
  }
  func.func @transform_11(%arg0: i32) -> (i32, i32) {
    %c0_i32 = arith.constant 0 : i32
    %c0_i32_0 = arith.constant 0 : i32
    return %arg0, %c0_i32 : i32, i32
  }
  func.func @transform_12(%arg0: i32) -> (i32, i32) {
    %c0_i32 = arith.constant 0 : i32
    %c0_i32_0 = arith.constant 0 : i32
    return %arg0, %c0_i32 : i32, i32
  }
}

</mosaic_0001>

<llo_original>
// kernel: vae_forward.1
$region0: #{vae_forward.1}
  #allocation0 [shape = 'u32[]', space=smem, size = 0x4, offset = 0x4, fixed_abs, tag = 'smem constant byte address 0x4 - core index']
  #allocation1 [shape = 'u32[144,128]{1,0:T(1,128)}', space=vmem, size = 0x12000, scoped, tag = 'internal scratch']
  %s0 = inlined_call_operand.hbm [shape: f32[256,128], index: 0, kind: input, shape index: {}]
  %s1 = inlined_call_operand.hbm [shape: f32[256,128], index: 1, kind: input, shape index: {}]
  %s2 = inlined_call_operand.hbm [shape: bf16[128,256], index: 2, kind: input, shape index: {}]
  %s3 = inlined_call_operand.vmem [shape: f32[1,256], index: 3, kind: input, shape index: {}]
  %s4 = inlined_call_operand.hbm [shape: bf16[256,256], index: 4, kind: input, shape index: {}]
  %s5 = inlined_call_operand.vmem [shape: f32[1,256], index: 5, kind: input, shape index: {}]
  %s6 = inlined_call_operand.hbm [shape: bf16[128,256], index: 6, kind: input, shape index: {}]
  %s7 = inlined_call_operand.vmem [shape: f32[1,256], index: 7, kind: input, shape index: {}]
  %s8 = inlined_call_operand.hbm [shape: bf16[256,128], index: 8, kind: input, shape index: {}]
  %s9 = inlined_call_operand.vmem [shape: f32[1,128], index: 9, kind: input, shape index: {}]
  %s10 = inlined_call_operand.hbm [shape: f32[256,128], index: 10, kind: output, shape index: {0}]
  %s11 = inlined_call_operand.hbm [shape: f32[256,128], index: 11, kind: output, shape index: {1}]
  %s12 = inlined_call_operand.hbm [shape: f32[256,128], index: 12, kind: output, shape index: {2}]
  %13 = xla_tuple %s10, %s11, %s12
  %s14 = sld [smem:[#allocation0]]
  $region113: #{vae_forward.1} parent=0
    _
  %s16 = ssub.s32 1, %s14
  %s17 = scalar_select 0, %s16, %s14
  $region1: #{vae_forward.1} parent=0
    #allocation2 [shape = 'u8[131072]{0}', space=vmem, size = 0x20000, scoped, tag = 'input window, operand 0']
    #allocation3 [shape = 's32[2]{0}', space=sflag, size = 0x8, scoped, tag = 'scoped memory for vae_forward.1']
    #allocation4 [shape = 's32[2]{0}', space=sflag, size = 0x8, scoped, tag = 'scoped memory for vae_forward.1']
    #allocation5 [shape = 'u8[131072]{0}', space=vmem, size = 0x20000, scoped, tag = 'input window, operand 1']
    #allocation6 [shape = 's32[2]{0}', space=sflag, size = 0x8, scoped, tag = 'scoped memory for vae_forward.1']
    #allocation7 [shape = 'u8[65536]{0}', space=vmem, size = 0x10000, scoped, tag = 'input window, operand 2, single buffered']
    #allocation8 [shape = 'u8[131072]{0}', space=vmem, size = 0x20000, scoped, tag = 'input window, operand 4, single buffered']
    #allocation9 [shape = 's32[1]{0}', space=sflag, size = 0x4, scoped, tag = 'scoped memory for vae_forward.1']
    #allocation10 [shape = 'u8[65536]{0}', space=vmem, size = 0x10000, scoped, tag = 'input window, operand 6, single buffered']
    #allocation11 [shape = 'u8[65536]{0}', space=vmem, size = 0x10000, scoped, tag = 'input window, operand 8, single buffered']
    #allocation12 [shape = 's32[1]{0}', space=sflag, size = 0x4, scoped, tag = 'scoped memory for vae_forward.1']
    #allocation13 [shape = 'u8[131072]{0}', space=vmem, size = 0x20000, scoped, tag = 'output window, operand 0']
    #allocation14 [shape = 'u8[131072]{0}', space=vmem, size = 0x20000, scoped, tag = 'output window, operand 1']
    #allocation15 [shape = 's32[2]{0}', space=sflag, size = 0x8, scoped, tag = 'scoped memory for vae_forward.1']
    #allocation16 [shape = 'u8[131072]{0}', space=vmem, size = 0x20000, scoped, tag = 'output window, operand 2']
    %18 = vsyncpa [#allocation3], 0
    %s19 = scalar_lea.sflag [#allocation3], 1
    %20 = vsyncpa %s19, 0
    %21 = vsyncpa [#allocation6], 0
    %s22 = scalar_lea.sflag [#allocation6], 1
    %23 = vsyncpa %s22, 0
    %24 = vsyncpa [#allocation9], 0
    %25 = vsyncpa [#allocation12], 0
    %26 = vsyncpa [#allocation4], 0
    %s27 = scalar_lea.sflag [#allocation4], 1
    %28 = vsyncpa %s27, 0
    %29 = vsyncpa [#allocation15], 0
    %s30 = scalar_lea.sflag [#allocation15], 1
    %31 = vsyncpa %s30, 0
    loop: start=0, step=1, limit=4
    $region2: #{vae_forward.1} parent=1 // loop_pre_header
      _
    $region3: #{vae_forward.1} parent=1 // loop_header
      %s33 = sphi 0, %s37
      %p34 = scmp.ge.s32.totalorder %s33, 4
      %s43 = sphi 0, %s45
      %s46 = sphi 0, %s43
      %s47 = sphi 0, %s46
      %s63 = sphi 0, %s47
      %s69 = sphi 0, %s71
      %s72 = sphi 0, %s69
      %s73 = sphi 0, %s72
      %s89 = sphi 0, %s73
      %s93 = sphi 0, %s93
      %s95 = sphi 0, %s93
      %s96 = sphi 0, %s95
      %s110 = sphi 0, %s96
      %s114 = sphi 0, %s114
      %s116 = sphi 0, %s114
      %s117 = sphi 0, %s116
      %s131 = sphi 0, %s117
      %s135 = sphi 0, %s135
      %s137 = sphi 0, %s135
      %s138 = sphi 0, %s137
      %s152 = sphi 0, %s138
      %s156 = sphi 0, %s156
      %s158 = sphi 0, %s156
      %s159 = sphi 0, %s158
      %s173 = sphi 0, %s159
      %s177 = sphi 0, %s177
      %s179 = sphi 0, %s177
      %s180 = sphi 0, %s179
      %s194 = sphi 0, %s180
      %s198 = sphi 0, %s198
      %s200 = sphi 0, %s198
      %s201 = sphi 0, %s200
      %s215 = sphi 0, %s201
      %s219 = sphi 0, %s219
      %s221 = sphi 0, %s219
      %s222 = sphi 0, %s221
      %s236 = sphi 0, %s222
      %s240 = sphi 0, %s240
      %s242 = sphi 0, %s240
      %s243 = sphi 0, %s242
      %s257 = sphi 0, %s243
      %s263 = sphi 0, %s265
      %s266 = sphi 0, %s263
      %s267 = sphi 0, %s266
      %s283 = sphi 0, %s267
      %s289 = sphi 0, %s291
      %s292 = sphi 0, %s289
      %s293 = sphi 0, %s292
      %s309 = sphi 0, %s293
      %s315 = sphi 0, %s317
      %s318 = sphi 0, %s315
      %s319 = sphi 0, %s318
      %s335 = sphi 0, %s319
    $region4: #{vae_forward.1} parent=1 // loop_header_branch
      %36 = sbr.rel (%p34) target = $region8
    $region5: #{vae_forward.1} parent=1 // loop_body
      %s38 = ssub.s32 %s33, 1
      %s39 = ssub.s32 %s33, 2
      %s40 = sadd.s32 %s33, 1
      %s41 = ssub.s32 %s33, %s40
      %p42 = scmp.eq.s32.totalorder %s41, 0
      %s44 = sadd.s32 %s43, 1
      %s45 = scalar_select %p42, %s43, %s44
      %p48 = pneg %p42
      %p49 = scmp.eq.s32.totalorder %s33, 1
      %p50 = por %p48, %p49
      %p51 = scmp.ne.s32.totalorder %s43, %s46
      %p52 = scmp.eq.s32.totalorder %s33, 0
      %p53 = por %p51, %p52
      %p54 = scmp.ne.s32.totalorder %s43, %s46
      %p55 = scmp.eq.s32.totalorder %s38, 1
      %p56 = por %p54, %p55
      %p57 = scmp.ne.s32.totalorder %s46, %s47
      %p58 = scmp.eq.s32.totalorder %s38, 0
      %p59 = por %p57, %p58
      %p60 = scmp.ne.s32.totalorder %s46, %s47
      %p61 = scmp.eq.s32.totalorder %s39, 1
      %p62 = por %p60, %p61
      %p64 = scmp.ne.s32.totalorder %s47, %s63
      %p65 = scmp.eq.s32.totalorder %s39, 0
      %p66 = por %p64, %p65
      %s67 = ssub.s32 %s33, %s40
      %p68 = scmp.eq.s32.totalorder %s67, 0
      %s70 = sadd.s32 %s69, 1
      %s71 = scalar_select %p68, %s69, %s70
      %p74 = pneg %p68
      %p75 = scmp.eq.s32.totalorder %s33, 1
      %p76 = por %p74, %p75
      %p77 = scmp.ne.s32.totalorder %s69, %s72
      %p78 = scmp.eq.s32.totalorder %s33, 0
      %p79 = por %p77, %p78
      %p80 = scmp.ne.s32.totalorder %s69, %s72
      %p81 = scmp.eq.s32.totalorder %s38, 1
      %p82 = por %p80, %p81
      %p83 = scmp.ne.s32.totalorder %s72, %s73
      %p84 = scmp.eq.s32.totalorder %s38, 0
      %p85 = por %p83, %p84
      %p86 = scmp.ne.s32.totalorder %s72, %s73
      %p87 = scmp.eq.s32.totalorder %s39, 1
      %p88 = por %p86, %p87
      %p90 = scmp.ne.s32.totalorder %s73, %s89
      %p91 = scmp.eq.s32.totalorder %s39, 0
      %p92 = por %p90, %p91
      %s94 = sadd.s32 %s93, 1
      %p97 = scmp.eq.s32.totalorder %s33, 1
      %p98 = scmp.ne.s32.totalorder %s93, %s95
      %p99 = scmp.eq.s32.totalorder %s33, 0
      %p100 = por %p98, %p99
      %p101 = scmp.ne.s32.totalorder %s93, %s95
      %p102 = scmp.eq.s32.totalorder %s38, 1
      %p103 = por %p101, %p102
      %p104 = scmp.ne.s32.totalorder %s95, %s96
      %p105 = scmp.eq.s32.totalorder %s38, 0
      %p106 = por %p104, %p105
      %p107 = scmp.ne.s32.totalorder %s95, %s96
      %p108 = scmp.eq.s32.totalorder %s39, 1
      %p109 = por %p107, %p108
      %p111 = scmp.ne.s32.totalorder %s96, %s110
      %p112 = scmp.eq.s32.totalorder %s39, 0
      %p113 = por %p111, %p112
      %s115 = sadd.s32 %s114, 1
      %p118 = scmp.eq.s32.totalorder %s33, 1
      %p119 = scmp.ne.s32.totalorder %s114, %s116
      %p120 = scmp.eq.s32.totalorder %s33, 0
      %p121 = por %p119, %p120
      %p122 = scmp.ne.s32.totalorder %s114, %s116
      %p123 = scmp.eq.s32.totalorder %s38, 1
      %p124 = por %p122, %p123
      %p125 = scmp.ne.s32.totalorder %s116, %s117
      %p126 = scmp.eq.s32.totalorder %s38, 0
      %p127 = por %p125, %p126
      %p128 = scmp.ne.s32.totalorder %s116, %s117
      %p129 = scmp.eq.s32.totalorder %s39, 1
      %p130 = por %p128, %p129
      %p132 = scmp.ne.s32.totalorder %s117, %s131
      %p133 = scmp.eq.s32.totalorder %s39, 0
      %p134 = por %p132, %p133
      %s136 = sadd.s32 %s135, 1
      %p139 = scmp.eq.s32.totalorder %s33, 1
      %p140 = scmp.ne.s32.totalorder %s135, %s137
      %p141 = scmp.eq.s32.totalorder %s33, 0
      %p142 = por %p140, %p141
      %p143 = scmp.ne.s32.totalorder %s135, %s137
      %p144 = scmp.eq.s32.totalorder %s38, 1
      %p145 = por %p143, %p144
      %p146 = scmp.ne.s32.totalorder %s137, %s138
      %p147 = scmp.eq.s32.totalorder %s38, 0
      %p148 = por %p146, %p147
      %p149 = scmp.ne.s32.totalorder %s137, %s138
      %p150 = scmp.eq.s32.totalorder %s39, 1
      %p151 = por %p149, %p150
      %p153 = scmp.ne.s32.totalorder %s138, %s152
      %p154 = scmp.eq.s32.totalorder %s39, 0
      %p155 = por %p153, %p154
      %s157 = sadd.s32 %s156, 1
      %p160 = scmp.eq.s32.totalorder %s33, 1
      %p161 = scmp.ne.s32.totalorder %s156, %s158
      %p162 = scmp.eq.s32.totalorder %s33, 0
      %p163 = por %p161, %p162
      %p164 = scmp.ne.s32.totalorder %s156, %s158
      %p165 = scmp.eq.s32.totalorder %s38, 1
      %p166 = por %p164, %p165
      %p167 = scmp.ne.s32.totalorder %s158, %s159
      %p168 = scmp.eq.s32.totalorder %s38, 0
      %p169 = por %p167, %p168
      %p170 = scmp.ne.s32.totalorder %s158, %s159
      %p171 = scmp.eq.s32.totalorder %s39, 1
      %p172 = por %p170, %p171
      %p174 = scmp.ne.s32.totalorder %s159, %s173
      %p175 = scmp.eq.s32.totalorder %s39, 0
      %p176 = por %p174, %p175
      %s178 = sadd.s32 %s177, 1
      %p181 = scmp.eq.s32.totalorder %s33, 1
      %p182 = scmp.ne.s32.totalorder %s177, %s179
      %p183 = scmp.eq.s32.totalorder %s33, 0
      %p184 = por %p182, %p183
      %p185 = scmp.ne.s32.totalorder %s177, %s179
      %p186 = scmp.eq.s32.totalorder %s38, 1
      %p187 = por %p185, %p186
      %p188 = scmp.ne.s32.totalorder %s179, %s180
      %p189 = scmp.eq.s32.totalorder %s38, 0
      %p190 = por %p188, %p189
      %p191 = scmp.ne.s32.totalorder %s179, %s180
      %p192 = scmp.eq.s32.totalorder %s39, 1
      %p193 = por %p191, %p192
      %p195 = scmp.ne.s32.totalorder %s180, %s194
      %p196 = scmp.eq.s32.totalorder %s39, 0
      %p197 = por %p195, %p196
      %s199 = sadd.s32 %s198, 1
      %p202 = scmp.eq.s32.totalorder %s33, 1
      %p203 = scmp.ne.s32.totalorder %s198, %s200
      %p204 = scmp.eq.s32.totalorder %s33, 0
      %p205 = por %p203, %p204
      %p206 = scmp.ne.s32.totalorder %s198, %s200
      %p207 = scmp.eq.s32.totalorder %s38, 1
      %p208 = por %p206, %p207
      %p209 = scmp.ne.s32.totalorder %s200, %s201
      %p210 = scmp.eq.s32.totalorder %s38, 0
      %p211 = por %p209, %p210
      %p212 = scmp.ne.s32.totalorder %s200, %s201
      %p213 = scmp.eq.s32.totalorder %s39, 1
      %p214 = por %p212, %p213
      %p216 = scmp.ne.s32.totalorder %s201, %s215
      %p217 = scmp.eq.s32.totalorder %s39, 0
      %p218 = por %p216, %p217
      %s220 = sadd.s32 %s219, 1
      %p223 = scmp.eq.s32.totalorder %s33, 1
      %p224 = scmp.ne.s32.totalorder %s219, %s221
      %p225 = scmp.eq.s32.totalorder %s33, 0
      %p226 = por %p224, %p225
      %p227 = scmp.ne.s32.totalorder %s219, %s221
      %p228 = scmp.eq.s32.totalorder %s38, 1
      %p229 = por %p227, %p228
      %p230 = scmp.ne.s32.totalorder %s221, %s222
      %p231 = scmp.eq.s32.totalorder %s38, 0
      %p232 = por %p230, %p231
      %p233 = scmp.ne.s32.totalorder %s221, %s222
      %p234 = scmp.eq.s32.totalorder %s39, 1
      %p235 = por %p233, %p234
      %p237 = scmp.ne.s32.totalorder %s222, %s236
      %p238 = scmp.eq.s32.totalorder %s39, 0
      %p239 = por %p237, %p238
      %s241 = sadd.s32 %s240, 1
      %p244 = scmp.eq.s32.totalorder %s33, 1
      %p245 = scmp.ne.s32.totalorder %s240, %s242
      %p246 = scmp.eq.s32.totalorder %s33, 0
      %p247 = por %p245, %p246
      %p248 = scmp.ne.s32.totalorder %s240, %s242
      %p249 = scmp.eq.s32.totalorder %s38, 1
      %p250 = por %p248, %p249
      %p251 = scmp.ne.s32.totalorder %s242, %s243
      %p252 = scmp.eq.s32.totalorder %s38, 0
      %p253 = por %p251, %p252
      %p254 = scmp.ne.s32.totalorder %s242, %s243
      %p255 = scmp.eq.s32.totalorder %s39, 1
      %p256 = por %p254, %p255
      %p258 = scmp.ne.s32.totalorder %s243, %s257
      %p259 = scmp.eq.s32.totalorder %s39, 0
      %p260 = por %p258, %p259
      %s261 = ssub.s32 %s33, %s40
      %p262 = scmp.eq.s32.totalorder %s261, 0
      %s264 = sadd.s32 %s263, 1
      %s265 = scalar_select %p262, %s263, %s264
      %p268 = pneg %p262
      %p269 = scmp.eq.s32.totalorder %s33, 1
      %p270 = por %p268, %p269
      %p271 = scmp.ne.s32.totalorder %s263, %s266
      %p272 = scmp.eq.s32.totalorder %s33, 0
      %p273 = por %p271, %p272
      %p274 = scmp.ne.s32.totalorder %s263, %s266
      %p275 = scmp.eq.s32.totalorder %s38, 1
      %p276 = por %p274, %p275
      %p277 = scmp.ne.s32.totalorder %s266, %s267
      %p278 = scmp.eq.s32.totalorder %s38, 0
      %p279 = por %p277, %p278
      %p280 = scmp.ne.s32.totalorder %s266, %s267
      %p281 = scmp.eq.s32.totalorder %s39, 1
      %p282 = por %p280, %p281
      %p284 = scmp.ne.s32.totalorder %s267, %s283
      %p285 = scmp.eq.s32.totalorder %s39, 0
      %p286 = por %p284, %p285
      %s287 = ssub.s32 %s33, %s40
      %p288 = scmp.eq.s32.totalorder %s287, 0
      %s290 = sadd.s32 %s289, 1
      %s291 = scalar_select %p288, %s289, %s290
      %p294 = pneg %p288
      %p295 = scmp.eq.s32.totalorder %s33, 1
      %p296 = por %p294, %p295
      %p297 = scmp.ne.s32.totalorder %s289, %s292
      %p298 = scmp.eq.s32.totalorder %s33, 0
      %p299 = por %p297, %p298
      %p300 = scmp.ne.s32.totalorder %s289, %s292
      %p301 = scmp.eq.s32.totalorder %s38, 1
      %p302 = por %p300, %p301
      %p303 = scmp.ne.s32.totalorder %s292, %s293
      %p304 = scmp.eq.s32.totalorder %s38, 0
      %p305 = por %p303, %p304
      %p306 = scmp.ne.s32.totalorder %s292, %s293
      %p307 = scmp.eq.s32.totalorder %s39, 1
      %p308 = por %p306, %p307
      %p310 = scmp.ne.s32.totalorder %s293, %s309
      %p311 = scmp.eq.s32.totalorder %s39, 0
      %p312 = por %p310, %p311
      %s313 = ssub.s32 %s33, %s40
      %p314 = scmp.eq.s32.totalorder %s313, 0
      %s316 = sadd.s32 %s315, 1
      %s317 = scalar_select %p314, %s315, %s316
      %p320 = pneg %p314
      %p321 = scmp.eq.s32.totalorder %s33, 1
      %p322 = por %p320, %p321
      %p323 = scmp.ne.s32.totalorder %s315, %s318
      %p324 = scmp.eq.s32.totalorder %s33, 0
      %p325 = por %p323, %p324
      %p326 = scmp.ne.s32.totalorder %s315, %s318
      %p327 = scmp.eq.s32.totalorder %s38, 1
      %p328 = por %p326, %p327
      %p329 = scmp.ne.s32.totalorder %s318, %s319
      %p330 = scmp.eq.s32.totalorder %s38, 0
      %p331 = por %p329, %p330
      %p332 = scmp.ne.s32.totalorder %s318, %s319
      %p333 = scmp.eq.s32.totalorder %s39, 1
      %p334 = por %p332, %p333
      %p336 = scmp.ne.s32.totalorder %s319, %s335
      %p337 = scmp.eq.s32.totalorder %s39, 0
      %p338 = por %p336, %p337
      %p339 = scmp.le.s32.totalorder 1, %s33
      %p340 = scmp.lt.s32.totalorder %s33, 3
      %p341 = pnand %p339, %p340
      %p342 = pneg %p341
      // Predicated region
      $region9: #{vae_forward.1} parent=5 // pred_check
        _
      $region10: #{vae_forward.1} parent=5 // pred_check_branch
        %344 = sbr.rel (%p341) target = $region12
      $region11: #{vae_forward.1} parent=5 // pred_region
        %s345 = ssub.s32 %s33, 1
        // Predicated region
        $region13: #{vae_forward.1} parent=11 // pred_check
          %p346 = pneg %p106
        $region14: #{vae_forward.1} parent=11 // pred_check_branch
          %348 = sbr.rel (%p346) target = $region16
        $region15: #{vae_forward.1} parent=11 // pred_region
          %s350 = ssub.s32 2048, 2048
          %351 = vsyncadd [#allocation6], %s350
          %s352 = sshll.u32 [#allocation7], 4
          %s353 = int_to_ptr.vmem [resolvable:$true] %s352
          %358 = dma.hbm_to_vmem [thread:$0]  %s2, 2048, %s353, [#allocation6], 128, 128, 8
        $region16: #{vae_forward.1} parent=11 // pred_fallthru
          _
        // Predicated region
        $region17: #{vae_forward.1} parent=11 // pred_check
          %p359 = pneg %p127
        $region18: #{vae_forward.1} parent=11 // pred_check_branch
          %361 = sbr.rel (%p359) target = $region20
        $region19: #{vae_forward.1} parent=11 // pred_region
          _
        $region20: #{vae_forward.1} parent=11 // pred_fallthru
          _
        // Predicated region
        $region21: #{vae_forward.1} parent=11 // pred_check
          %p362 = pneg %p148
        $region22: #{vae_forward.1} parent=11 // pred_check_branch
          %364 = sbr.rel (%p362) target = $region24
        $region23: #{vae_forward.1} parent=11 // pred_region
          %s366 = ssub.s32 4096, 4096
          %367 = vsyncadd [#allocation9], %s366
          %s368 = sshll.u32 [#allocation8], 4
          %s369 = int_to_ptr.vmem [resolvable:$true] %s368
          %374 = dma.hbm_to_vmem [thread:$0]  %s4, 4096, %s369, [#allocation9], 128, 128, 8
        $region24: #{vae_forward.1} parent=11 // pred_fallthru
          _
        // Predicated region
        $region25: #{vae_forward.1} parent=11 // pred_check
          %p375 = pneg %p169
        $region26: #{vae_forward.1} parent=11 // pred_check_branch
          %377 = sbr.rel (%p375) target = $region28
        $region27: #{vae_forward.1} parent=11 // pred_region
          _
        $region28: #{vae_forward.1} parent=11 // pred_fallthru
          _
        // Predicated region
        $region29: #{vae_forward.1} parent=11 // pred_check
          %p378 = pneg %p190
        $region30: #{vae_forward.1} parent=11 // pred_check_branch
          %380 = sbr.rel (%p378) target = $region32
        $region31: #{vae_forward.1} parent=11 // pred_region
          %s382 = ssub.s32 2048, 2048
          %383 = vsyncadd [#allocation9], %s382
          %s384 = sshll.u32 [#allocation10], 4
          %s385 = int_to_ptr.vmem [resolvable:$true] %s384
          %390 = dma.hbm_to_vmem [thread:$0]  %s6, 2048, %s385, [#allocation9], 128, 128, 8
        $region32: #{vae_forward.1} parent=11 // pred_fallthru
          _
        // Predicated region
        $region33: #{vae_forward.1} parent=11 // pred_check
          %p391 = pneg %p211
        $region34: #{vae_forward.1} parent=11 // pred_check_branch
          %393 = sbr.rel (%p391) target = $region36
        $region35: #{vae_forward.1} parent=11 // pred_region
          _
        $region36: #{vae_forward.1} parent=11 // pred_fallthru
          _
        // Predicated region
        $region37: #{vae_forward.1} parent=11 // pred_check
          %p394 = pneg %p232
        $region38: #{vae_forward.1} parent=11 // pred_check_branch
          %396 = sbr.rel (%p394) target = $region40
        $region39: #{vae_forward.1} parent=11 // pred_region
          %s398 = ssub.s32 2048, 2048
          %399 = vsyncadd [#allocation12], %s398
          %s400 = sshll.u32 [#allocation11], 4
          %s401 = int_to_ptr.vmem [resolvable:$true] %s400
          %406 = dma.hbm_to_vmem [thread:$0]  %s8, 2048, %s401, [#allocation12], 64, 64, 4
        $region40: #{vae_forward.1} parent=11 // pred_fallthru
          _
        // Predicated region
        $region41: #{vae_forward.1} parent=11 // pred_check
          %p407 = pneg %p253
        $region42: #{vae_forward.1} parent=11 // pred_check_branch
          %409 = sbr.rel (%p407) target = $region44
        $region43: #{vae_forward.1} parent=11 // pred_region
          _
        $region44: #{vae_forward.1} parent=11 // pred_fallthru
          _
      $region12: #{vae_forward.1} parent=5 // pred_fallthru
        _
      %p410 = scmp.lt.s32.totalorder %s33, 2
      // Predicated region
      $region45: #{vae_forward.1} parent=5 // pred_check
        %p411 = pneg %p410
      $region46: #{vae_forward.1} parent=5 // pred_check_branch
        %413 = sbr.rel (%p411) target = $region48
      $region47: #{vae_forward.1} parent=5 // pred_region
        // Predicated region
        $region49: #{vae_forward.1} parent=47 // pred_check
          %p414 = pneg %p53
        $region50: #{vae_forward.1} parent=47 // pred_check_branch
          %416 = sbr.rel (%p414) target = $region52
        $region51: #{vae_forward.1} parent=47 // pred_region
          %s417 = sand.u32 %s43, 1
          %s418 = scalar_lea.sflag [#allocation3], %s417
          %s419 = sand.u32 %s43, 1
          %s420 = smul.addr %s419, 128
          %s421 = scalar_lea.vmem [#allocation2], %s420
          %s422 = smul.u32 16, %s33
          %s424 = ssub.s32 2048, 2048
          %425 = vsyncadd %s418, %s424
          %s426 = smul.addr %s422, 128
          %s427 = scalar_lea.hbm %s0, %s426
          %s428 = sshll.u32 %s421, 4
          %s429 = int_to_ptr.vmem [resolvable:$true] %s428
          %434 = dma.hbm_to_vmem [thread:$0]  %s427, 2048, %s429, %s418, 128, 128, 8
        $region52: #{vae_forward.1} parent=47 // pred_fallthru
          _
        // Predicated region
        $region53: #{vae_forward.1} parent=47 // pred_check
          %p435 = pneg %p79
        $region54: #{vae_forward.1} parent=47 // pred_check_branch
          %437 = sbr.rel (%p435) target = $region56
        $region55: #{vae_forward.1} parent=47 // pred_region
          %s438 = sand.u32 %s33, 1
          %s439 = scalar_lea.sflag [#allocation6], %s438
          %s440 = sand.u32 %s69, 1
          %s441 = smul.addr %s440, 128
          %s442 = scalar_lea.vmem [#allocation5], %s441
          %s443 = smul.u32 16, %s33
          %s445 = ssub.s32 2048, 2048
          %446 = vsyncadd %s439, %s445
          %s447 = smul.addr %s443, 128
          %s448 = scalar_lea.hbm %s1, %s447
          %s449 = sshll.u32 %s442, 4
          %s450 = int_to_ptr.vmem [resolvable:$true] %s449
          %455 = dma.hbm_to_vmem [thread:$0]  %s448, 2048, %s450, %s439, 128, 128, 8
        $region56: #{vae_forward.1} parent=47 // pred_fallthru
          _
      $region48: #{vae_forward.1} parent=5 // pred_fallthru
        _
      %p456 = scmp.le.s32.totalorder 1, %s33
      %p457 = scmp.lt.s32.totalorder %s33, 3
      %p458 = pnand %p456, %p457
      %p459 = pneg %p458
      // Predicated region
      $region57: #{vae_forward.1} parent=5 // pred_check
        _
      $region58: #{vae_forward.1} parent=5 // pred_check_branch
        %461 = sbr.rel (%p458) target = $region60
      $region59: #{vae_forward.1} parent=5 // pred_region
        %s462 = ssub.s32 %s33, 1
        %s463 = sand.u32 %s46, 1
        %s464 = scalar_lea.sflag [#allocation3], %s463
        %s465 = sand.u32 %s46, 1
        %s466 = smul.addr %s465, 128
        %s467 = scalar_lea.vmem [#allocation2], %s466
        // Predicated region
        $region61: #{vae_forward.1} parent=59 // pred_check
          %p468 = pneg %p59
        $region62: #{vae_forward.1} parent=59 // pred_check_branch
          %470 = sbr.rel (%p468) target = $region64
        $region63: #{vae_forward.1} parent=59 // pred_region
          %471 = dma.done %s464, 2048
        $region64: #{vae_forward.1} parent=59 // pred_fallthru
          _
        %s472 = sand.u32 %s38, 1
        %s473 = scalar_lea.sflag [#allocation6], %s472
        %s474 = sand.u32 %s72, 1
        %s475 = smul.addr %s474, 128
        %s476 = scalar_lea.vmem [#allocation5], %s475
        // Predicated region
        $region65: #{vae_forward.1} parent=59 // pred_check
          %p477 = pneg %p85
        $region66: #{vae_forward.1} parent=59 // pred_check_branch
          %479 = sbr.rel (%p477) target = $region68
        $region67: #{vae_forward.1} parent=59 // pred_region
          %480 = dma.done %s473, 2048
        $region68: #{vae_forward.1} parent=59 // pred_fallthru
          _
        // Predicated region
        $region69: #{vae_forward.1} parent=59 // pred_check
          %p481 = pneg %p106
        $region70: #{vae_forward.1} parent=59 // pred_check_branch
          %483 = sbr.rel (%p481) target = $region72
        $region71: #{vae_forward.1} parent=59 // pred_region
          %484 = dma.done [#allocation6], 2048
        $region72: #{vae_forward.1} parent=59 // pred_fallthru
          _
        // Predicated region
        $region73: #{vae_forward.1} parent=59 // pred_check
          %p485 = pneg %p148
        $region74: #{vae_forward.1} parent=59 // pred_check_branch
          %487 = sbr.rel (%p485) target = $region76
        $region75: #{vae_forward.1} parent=59 // pred_region
          %488 = dma.done [#allocation9], 4096
        $region76: #{vae_forward.1} parent=59 // pred_fallthru
          _
        // Predicated region
        $region77: #{vae_forward.1} parent=59 // pred_check
          %p489 = pneg %p190
        $region78: #{vae_forward.1} parent=59 // pred_check_branch
          %491 = sbr.rel (%p489) target = $region80
        $region79: #{vae_forward.1} parent=59 // pred_region
          %492 = dma.done [#allocation9], 2048
        $region80: #{vae_forward.1} parent=59 // pred_fallthru
          _
        // Predicated region
        $region81: #{vae_forward.1} parent=59 // pred_check
          %p493 = pneg %p232
        $region82: #{vae_forward.1} parent=59 // pred_check_branch
          %495 = sbr.rel (%p493) target = $region84
        $region83: #{vae_forward.1} parent=59 // pred_region
          %496 = dma.done [#allocation12], 2048
        $region84: #{vae_forward.1} parent=59 // pred_fallthru
          _
        %s497 = sand.u32 %s46, 1
        %s498 = scalar_lea.sflag [#allocation3], %s497
        %s499 = sand.u32 %s46, 1
        %s500 = smul.addr %s499, 128
        %s501 = scalar_lea.vmem [#allocation2], %s500
        %p502 = pneg %p59
        %p503 = pneg %p56
        %s504 = sand.u32 %s38, 1
        %s505 = scalar_lea.sflag [#allocation6], %s504
        %s506 = sand.u32 %s72, 1
        %s507 = smul.addr %s506, 128
        %s508 = scalar_lea.vmem [#allocation5], %s507
        %p509 = pneg %p85
        %p510 = pneg %p82
        %p511 = pneg %p106
        %p512 = pneg %p103
        %p513 = pneg %p127
        %p514 = pneg %p124
        %p515 = pneg %p148
        %p516 = pneg %p145
        %p517 = pneg %p169
        %p518 = pneg %p166
        %p519 = pneg %p190
        %p520 = pneg %p187
        %p521 = pneg %p211
        %p522 = pneg %p208
        %p523 = pneg %p232
        %p524 = pneg %p229
        %p525 = pneg %p253
        %p526 = pneg %p250
        %p527 = pneg %p279
        %p528 = pneg %p276
        %s529 = sand.u32 %s266, 1
        %s530 = scalar_lea.sflag [#allocation4], %s529
        %s531 = sand.u32 %s266, 1
        %s532 = smul.addr %s531, 128
        %s533 = scalar_lea.vmem [#allocation13], %s532
        %p534 = pneg %p305
        %p535 = pneg %p302
        %s536 = sand.u32 %s38, 1
        %s537 = scalar_lea.sflag [#allocation15], %s536
        %s538 = sand.u32 %s292, 1
        %s539 = smul.addr %s538, 128
        %s540 = scalar_lea.vmem [#allocation14], %s539
        %p541 = pneg %p331
        %p542 = pneg %p328
        %s543 = sand.u32 %s38, 1
        %s544 = scalar_lea.sflag [#allocation15], %s543
        %s545 = sand.u32 %s318, 1
        %s546 = smul.addr %s545, 128
        %s547 = scalar_lea.vmem [#allocation16], %s546
        %s548 = smul.u32 16, %s38
        %s549 = smul.u32 16, %s38
        %s550 = smul.u32 16, %s38
        %s551 = smul.u32 16, %s38
        %s552 = smul.u32 16, %s38
        %v554 = vld [vmem:[%s467] sm:$0xff]
        %v555 = vld [vmem:[%s467 + $0x8] sm:$0xff]
        %v556 = vld [vmem:[%s467 + $0x10] sm:$0xff]
        %v557 = vld [vmem:[%s467 + $0x18] sm:$0xff]
        %v558 = vld [vmem:[%s467 + $0x20] sm:$0xff]
        %v559 = vld [vmem:[%s467 + $0x28] sm:$0xff]
        %v560 = vld [vmem:[%s467 + $0x30] sm:$0xff]
        %v561 = vld [vmem:[%s467 + $0x38] sm:$0xff]
        %v562 = vld [vmem:[%s467 + $0x40] sm:$0xff]
        %v563 = vld [vmem:[%s467 + $0x48] sm:$0xff]
        %v564 = vld [vmem:[%s467 + $0x50] sm:$0xff]
        %v565 = vld [vmem:[%s467 + $0x58] sm:$0xff]
        %v566 = vld [vmem:[%s467 + $0x60] sm:$0xff]
        %v567 = vld [vmem:[%s467 + $0x68] sm:$0xff]
        %v568 = vld [vmem:[%s467 + $0x70] sm:$0xff]
        %v569 = vld [vmem:[%s467 + $0x78] sm:$0xff]
        %v570 = vld [vmem:[%s476] sm:$0xff]
        %v571 = vld [vmem:[%s476 + $0x8] sm:$0xff]
        %v572 = vld [vmem:[%s476 + $0x10] sm:$0xff]
        %v573 = vld [vmem:[%s476 + $0x18] sm:$0xff]
        %v574 = vld [vmem:[%s476 + $0x20] sm:$0xff]
        %v575 = vld [vmem:[%s476 + $0x28] sm:$0xff]
        %v576 = vld [vmem:[%s476 + $0x30] sm:$0xff]
        %v577 = vld [vmem:[%s476 + $0x38] sm:$0xff]
        %v578 = vld [vmem:[%s476 + $0x40] sm:$0xff]
        %v579 = vld [vmem:[%s476 + $0x48] sm:$0xff]
        %v580 = vld [vmem:[%s476 + $0x50] sm:$0xff]
        %v581 = vld [vmem:[%s476 + $0x58] sm:$0xff]
        %v582 = vld [vmem:[%s476 + $0x60] sm:$0xff]
        %v583 = vld [vmem:[%s476 + $0x68] sm:$0xff]
        %v584 = vld [vmem:[%s476 + $0x70] sm:$0xff]
        %v585 = vld [vmem:[%s476 + $0x78] sm:$0xff]
        %v586 = vpack.c.bf16 %v555, %v554
        %v587 = vpack.c.bf16 %v557, %v556
        %v588 = vpack.c.bf16 %v559, %v558
        %v589 = vpack.c.bf16 %v561, %v560
        %v590 = vpack.c.bf16 %v563, %v562
        %v591 = vpack.c.bf16 %v565, %v564
        %v592 = vpack.c.bf16 %v567, %v566
        %v593 = vpack.c.bf16 %v569, %v568
        %v594 = vld [vmem:[#allocation7] sm:$0xff]
        %v595 = vld [vmem:[#allocation7 + $0x8] sm:$0xff]
        %v596 = vld [vmem:[#allocation7 + $0x10] sm:$0xff]
        %v597 = vld [vmem:[#allocation7 + $0x18] sm:$0xff]
        %v598 = vld [vmem:[#allocation7 + $0x20] sm:$0xff]
        %v599 = vld [vmem:[#allocation7 + $0x28] sm:$0xff]
        %v600 = vld [vmem:[#allocation7 + $0x30] sm:$0xff]
        %v601 = vld [vmem:[#allocation7 + $0x38] sm:$0xff]
        %v602 = vld [vmem:[#allocation7 + $0x40] sm:$0xff]
        %v603 = vld [vmem:[#allocation7 + $0x48] sm:$0xff]
        %v604 = vld [vmem:[#allocation7 + $0x50] sm:$0xff]
        %v605 = vld [vmem:[#allocation7 + $0x58] sm:$0xff]
        %v606 = vld [vmem:[#allocation7 + $0x60] sm:$0xff]
        %v607 = vld [vmem:[#allocation7 + $0x68] sm:$0xff]
        %v608 = vld [vmem:[#allocation7 + $0x70] sm:$0xff]
        %v609 = vld [vmem:[#allocation7 + $0x78] sm:$0xff]
        %v610 = vld [vmem:[%s3] sm:$0x3]
        %v612 = vlaneseq
        %v613 = vshrl.u32 %v612, 7
        %v614 = vsub.s32 0, %v613
        %v615 = vrot.slane %v610, %v614
        %v616 = vlaneseq
        %v617 = vshrl.u32 %v616, 7
        %v618 = vsub.s32 1, %v617
        %v619 = vrot.slane %v610, %v618
        %v638 = vunpack.c.l.b16 %v594
        %v639 = vunpack.c.h.b16 %v594
        %v640 = vunpack.c.l.b16 %v595
        %v641 = vunpack.c.h.b16 %v595
        %v642 = vunpack.c.l.b16 %v596
        %v643 = vunpack.c.h.b16 %v596
        %v644 = vunpack.c.l.b16 %v597
        %v645 = vunpack.c.h.b16 %v597
        %v646 = vunpack.c.l.b16 %v598
        %v647 = vunpack.c.h.b16 %v598
        %v648 = vunpack.c.l.b16 %v599
        %v649 = vunpack.c.h.b16 %v599
        %v650 = vunpack.c.l.b16 %v600
        %v651 = vunpack.c.h.b16 %v600
        %v652 = vunpack.c.l.b16 %v601
        %v653 = vunpack.c.h.b16 %v601
        %v654 = vunpack.c.l.b16 %v602
        %v655 = vunpack.c.h.b16 %v602
        %v656 = vunpack.c.l.b16 %v603
        %v657 = vunpack.c.h.b16 %v603
        %v658 = vunpack.c.l.b16 %v604
        %v659 = vunpack.c.h.b16 %v604
        %v660 = vunpack.c.l.b16 %v605
        %v661 = vunpack.c.h.b16 %v605
        %v662 = vunpack.c.l.b16 %v606
        %v663 = vunpack.c.h.b16 %v606
        %v664 = vunpack.c.l.b16 %v607
        %v665 = vunpack.c.h.b16 %v607
        %v666 = vunpack.c.l.b16 %v608
        %v667 = vunpack.c.h.b16 %v608
        %v668 = vunpack.c.l.b16 %v609
        %v669 = vunpack.c.h.b16 %v609
        %v670 = vpack.c.b16 %v640, %v638
        %v671 = vpack.c.b16 %v641, %v639
        %v672 = vpack.c.b16 %v644, %v642
        %v673 = vpack.c.b16 %v645, %v643
        %v674 = vpack.c.b16 %v648, %v646
        %v675 = vpack.c.b16 %v649, %v647
        %v676 = vpack.c.b16 %v652, %v650
        %v677 = vpack.c.b16 %v653, %v651
        %v678 = vpack.c.b16 %v656, %v654
        %v679 = vpack.c.b16 %v657, %v655
        %v680 = vpack.c.b16 %v660, %v658
        %v681 = vpack.c.b16 %v661, %v659
        %v682 = vpack.c.b16 %v664, %v662
        %v683 = vpack.c.b16 %v665, %v663
        %v684 = vpack.c.b16 %v668, %v666
        %v685 = vpack.c.b16 %v669, %v667
        %702 = vmatprep.subr.bf16.mxu0 %v671
        %703 = vmatpush1.bf16.msra.mxu0 %v670
        %704 = vmatprep.subr.bf16.mxu0 %v673
        %705 = vmatpush1.bf16.msra.mxu0 %v672
        %706 = vmatprep.subr.bf16.mxu0 %v675
        %707 = vmatpush1.bf16.msra.mxu0 %v674
        %708 = vmatprep.subr.bf16.mxu0 %v677
        %709 = vmatpush1.bf16.msra.mxu0 %v676
        %710 = vmatprep.subr.bf16.mxu0 %v679
        %711 = vmatpush1.bf16.msra.mxu0 %v678
        %712 = vmatprep.subr.bf16.mxu0 %v681
        %713 = vmatpush1.bf16.msra.mxu0 %v680
        %714 = vmatprep.subr.bf16.mxu0 %v683
        %715 = vmatpush1.bf16.msra.mxu0 %v682
        %716 = vmatprep.subr.bf16.mxu0 %v685
        %717 = vmatpush1.bf16.msra.mxu0 %v684
        %718 = vmatprep.subr.bf16.mxu0 0
        %719 = vmatpush1.bf16.msra.mxu0 0
        %720 = vmatprep.subr.bf16.mxu0 0
        %721 = vmatpush1.bf16.msra.mxu0 0
        %722 = vmatprep.subr.bf16.mxu0 0
        %723 = vmatpush1.bf16.msra.mxu0 0
        %724 = vmatprep.subr.bf16.mxu0 0
        %725 = vmatpush1.bf16.msra.mxu0 0
        %726 = vmatprep.subr.bf16.mxu0 0
        %727 = vmatpush1.bf16.msra.mxu0 0
        %728 = vmatprep.subr.bf16.mxu0 0
        %729 = vmatpush1.bf16.msra.mxu0 0
        %730 = vmatprep.subr.bf16.mxu0 0
        %731 = vmatpush1.bf16.msra.mxu0 0
        %732 = vmatprep.subr.bf16.mxu0 0
        %733 = vmatpush1.bf16.msra.mxu0 0
        %734 = vmatprep.mubr.bf16.mxu0 0
        %735 = vmatmul.mubr.bf16.gmra.mrb[0].mxu0 %v586
        %v736 = vpop.f32.mrb[0].mxu0
        %v737 = vadd.f32 %v615, %v736
        %v738 = vpop.f32.mrb[0].mxu0
        %v739 = vadd.f32 %v619, %v738
        %v740 = vpop.f32.mrb[0].mxu0
        %v741 = vadd.f32 %v615, %v740
        %v742 = vpop.f32.mrb[0].mxu0
        %v743 = vadd.f32 %v619, %v742
        %744 = vmatprep.mubr.bf16.mxu0 0
        %745 = vmatmul.mubr.bf16.gmra.mrb[0].mxu0 %v587
        %v746 = vpop.f32.mrb[0].mxu0
        %v747 = vadd.f32 %v615, %v746
        %v748 = vpop.f32.mrb[0].mxu0
        %v749 = vadd.f32 %v619, %v748
        %v750 = vpop.f32.mrb[0].mxu0
        %v751 = vadd.f32 %v615, %v750
        %v752 = vpop.f32.mrb[0].mxu0
        %v753 = vadd.f32 %v619, %v752
        %754 = vmatprep.mubr.bf16.mxu0 0
        %755 = vmatmul.mubr.bf16.gmra.mrb[0].mxu0 %v588
        %v756 = vpop.f32.mrb[0].mxu0
        %v757 = vadd.f32 %v615, %v756
        %v758 = vpop.f32.mrb[0].mxu0
        %v759 = vadd.f32 %v619, %v758
        %v760 = vpop.f32.mrb[0].mxu0
        %v761 = vadd.f32 %v615, %v760
        %v762 = vpop.f32.mrb[0].mxu0
        %v763 = vadd.f32 %v619, %v762
        %764 = vmatprep.mubr.bf16.mxu0 0
        %765 = vmatmul.mubr.bf16.gmra.mrb[0].mxu0 %v589
        %v766 = vpop.f32.mrb[0].mxu0
        %v767 = vadd.f32 %v615, %v766
        %v768 = vpop.f32.mrb[0].mxu0
        %v769 = vadd.f32 %v619, %v768
        %v770 = vpop.f32.mrb[0].mxu0
        %v771 = vadd.f32 %v615, %v770
        %v772 = vpop.f32.mrb[0].mxu0
        %v773 = vadd.f32 %v619, %v772
        %774 = vmatprep.mubr.bf16.mxu0 0
        %775 = vmatmul.mubr.bf16.gmra.mrb[0].mxu0 %v590
        %v776 = vpop.f32.mrb[0].mxu0
        %v777 = vadd.f32 %v615, %v776
        %v778 = vpop.f32.mrb[0].mxu0
        %v779 = vadd.f32 %v619, %v778
        %v780 = vpop.f32.mrb[0].mxu0
        %v781 = vadd.f32 %v615, %v780
        %v782 = vpop.f32.mrb[0].mxu0
        %v783 = vadd.f32 %v619, %v782
        %784 = vmatprep.mubr.bf16.mxu0 0
        %785 = vmatmul.mubr.bf16.gmra.mrb[0].mxu0 %v591
        %v786 = vpop.f32.mrb[0].mxu0
        %v787 = vadd.f32 %v615, %v786
        %v788 = vpop.f32.mrb[0].mxu0
        %v789 = vadd.f32 %v619, %v788
        %v790 = vpop.f32.mrb[0].mxu0
        %v791 = vadd.f32 %v615, %v790
        %v792 = vpop.f32.mrb[0].mxu0
        %v793 = vadd.f32 %v619, %v792
        %794 = vmatprep.mubr.bf16.mxu0 0
        %795 = vmatmul.mubr.bf16.gmra.mrb[0].mxu0 %v592
        %v796 = vpop.f32.mrb[0].mxu0
        %v797 = vadd.f32 %v615, %v796
        %v798 = vpop.f32.mrb[0].mxu0
        %v799 = vadd.f32 %v619, %v798
        %v800 = vpop.f32.mrb[0].mxu0
        %v801 = vadd.f32 %v615, %v800
        %v802 = vpop.f32.mrb[0].mxu0
        %v803 = vadd.f32 %v619, %v802
        %804 = vmatprep.mubr.bf16.mxu0 0
        %805 = vmatmul.mubr.bf16.gmra.mrb[0].mxu0 %v593
        %v806 = vpop.f32.mrb[0].mxu0
        %v807 = vadd.f32 %v615, %v806
        %v808 = vpop.f32.mrb[0].mxu0
        %v809 = vadd.f32 %v619, %v808
        %v810 = vpop.f32.mrb[0].mxu0
        %v811 = vadd.f32 %v615, %v810
        %v812 = vpop.f32.mrb[0].mxu0
        %v813 = vadd.f32 %v619, %v812
        %814 = vdwg.mxu0
        %v815 = vmax.f32 %v737, 0.0
        %v816 = vmax.f32 %v739, 0.0
        %v817 = vmax.f32 %v741, 0.0
        %v818 = vmax.f32 %v743, 0.0
        %v819 = vmax.f32 %v747, 0.0
        %v820 = vmax.f32 %v749, 0.0
        %v821 = vmax.f32 %v751, 0.0
        %v822 = vmax.f32 %v753, 0.0
        %v823 = vmax.f32 %v757, 0.0
        %v824 = vmax.f32 %v759, 0.0
        %v825 = vmax.f32 %v761, 0.0
        %v826 = vmax.f32 %v763, 0.0
        %v827 = vmax.f32 %v767, 0.0
        %v828 = vmax.f32 %v769, 0.0
        %v829 = vmax.f32 %v771, 0.0
        %v830 = vmax.f32 %v773, 0.0
        %v831 = vmax.f32 %v777, 0.0
        %v832 = vmax.f32 %v779, 0.0
        %v833 = vmax.f32 %v781, 0.0
        %v834 = vmax.f32 %v783, 0.0
        %v835 = vmax.f32 %v787, 0.0
        %v836 = vmax.f32 %v789, 0.0
        %v837 = vmax.f32 %v791, 0.0
        %v838 = vmax.f32 %v793, 0.0
        %v839 = vmax.f32 %v797, 0.0
        %v840 = vmax.f32 %v799, 0.0
        %v841 = vmax.f32 %v801, 0.0
        %v842 = vmax.f32 %v803, 0.0
        %v843 = vmax.f32 %v807, 0.0
        %v844 = vmax.f32 %v809, 0.0
        %v845 = vmax.f32 %v811, 0.0
        %v846 = vmax.f32 %v813, 0.0
        %v847 = vpack.c.bf16 %v817, %v815
        %v848 = vpack.c.bf16 %v818, %v816
        %v849 = vpack.c.bf16 %v821, %v819
        %v850 = vpack.c.bf16 %v822, %v820
        %v851 = vpack.c.bf16 %v825, %v823
        %v852 = vpack.c.bf16 %v826, %v824
        %v853 = vpack.c.bf16 %v829, %v827
        %v854 = vpack.c.bf16 %v830, %v828
        %v855 = vpack.c.bf16 %v833, %v831
        %v856 = vpack.c.bf16 %v834, %v832
        %v857 = vpack.c.bf16 %v837, %v835
        %v858 = vpack.c.bf16 %v838, %v836
        %v859 = vpack.c.bf16 %v841, %v839
        %v860 = vpack.c.bf16 %v842, %v840
        %v861 = vpack.c.bf16 %v845, %v843
        %v862 = vpack.c.bf16 %v846, %v844
        %v863 = vld [vmem:[#allocation8] sm:$0xff]
        %v864 = vld [vmem:[#allocation8 + $0x8] sm:$0xff]
        %v865 = vld [vmem:[#allocation8 + $0x10] sm:$0xff]
        %v866 = vld [vmem:[#allocation8 + $0x18] sm:$0xff]
        %v867 = vld [vmem:[#allocation8 + $0x20] sm:$0xff]
        %v868 = vld [vmem:[#allocation8 + $0x28] sm:$0xff]
        %v869 = vld [vmem:[#allocation8 + $0x30] sm:$0xff]
        %v870 = vld [vmem:[#allocation8 + $0x38] sm:$0xff]
        %v871 = vld [vmem:[#allocation8 + $0x40] sm:$0xff]
        %v872 = vld [vmem:[#allocation8 + $0x48] sm:$0xff]
        %v873 = vld [vmem:[#allocation8 + $0x50] sm:$0xff]
        %v874 = vld [vmem:[#allocation8 + $0x58] sm:$0xff]
        %v875 = vld [vmem:[#allocation8 + $0x60] sm:$0xff]
        %v876 = vld [vmem:[#allocation8 + $0x68] sm:$0xff]
        %v877 = vld [vmem:[#allocation8 + $0x70] sm:$0xff]
        %v878 = vld [vmem:[#allocation8 + $0x78] sm:$0xff]
        %v879 = vld [vmem:[#allocation8 + $0x80] sm:$0xff]
        %v880 = vld [vmem:[#allocation8 + $0x88] sm:$0xff]
        %v881 = vld [vmem:[#allocation8 + $0x90] sm:$0xff]
        %v882 = vld [vmem:[#allocation8 + $0x98] sm:$0xff]
        %v883 = vld [vmem:[#allocation8 + $0xa0] sm:$0xff]
        %v884 = vld [vmem:[#allocation8 + $0xa8] sm:$0xff]
        %v885 = vld [vmem:[#allocation8 + $0xb0] sm:$0xff]
        %v886 = vld [vmem:[#allocation8 + $0xb8] sm:$0xff]
        %v887 = vld [vmem:[#allocation8 + $0xc0] sm:$0xff]
        %v888 = vld [vmem:[#allocation8 + $0xc8] sm:$0xff]
        %v889 = vld [vmem:[#allocation8 + $0xd0] sm:$0xff]
        %v890 = vld [vmem:[#allocation8 + $0xd8] sm:$0xff]
        %v891 = vld [vmem:[#allocation8 + $0xe0] sm:$0xff]
        %v892 = vld [vmem:[#allocation8 + $0xe8] sm:$0xff]
        %v893 = vld [vmem:[#allocation8 + $0xf0] sm:$0xff]
        %v894 = vld [vmem:[#allocation8 + $0xf8] sm:$0xff]
        %v895 = vld [vmem:[%s5] sm:$0x3]
        %v897 = vlaneseq
        %v898 = vshrl.u32 %v897, 7
        %v899 = vsub.s32 0, %v898
        %v900 = vrot.slane %v895, %v899
        %v901 = vlaneseq
        %v902 = vshrl.u32 %v901, 7
        %v903 = vsub.s32 1, %v902
        %v904 = vrot.slane %v895, %v903
        %v939 = vunpack.c.l.b16 %v863
        %v940 = vunpack.c.h.b16 %v863
        %v941 = vunpack.c.l.b16 %v864
        %v942 = vunpack.c.h.b16 %v864
        %v943 = vunpack.c.l.b16 %v865
        %v944 = vunpack.c.h.b16 %v865
        %v945 = vunpack.c.l.b16 %v866
        %v946 = vunpack.c.h.b16 %v866
        %v947 = vunpack.c.l.b16 %v867
        %v948 = vunpack.c.h.b16 %v867
        %v949 = vunpack.c.l.b16 %v868
        %v950 = vunpack.c.h.b16 %v868
        %v951 = vunpack.c.l.b16 %v869
        %v952 = vunpack.c.h.b16 %v869
        %v953 = vunpack.c.l.b16 %v870
        %v954 = vunpack.c.h.b16 %v870
        %v955 = vunpack.c.l.b16 %v871
        %v956 = vunpack.c.h.b16 %v871
        %v957 = vunpack.c.l.b16 %v872
        %v958 = vunpack.c.h.b16 %v872
        %v959 = vunpack.c.l.b16 %v873
        %v960 = vunpack.c.h.b16 %v873
        %v961 = vunpack.c.l.b16 %v874
        %v962 = vunpack.c.h.b16 %v874
        %v963 = vunpack.c.l.b16 %v875
        %v964 = vunpack.c.h.b16 %v875
        %v965 = vunpack.c.l.b16 %v876
        %v966 = vunpack.c.h.b16 %v876
        %v967 = vunpack.c.l.b16 %v877
        %v968 = vunpack.c.h.b16 %v877
        %v969 = vunpack.c.l.b16 %v878
        %v970 = vunpack.c.h.b16 %v878
        %v971 = vunpack.c.l.b16 %v879
        %v972 = vunpack.c.h.b16 %v879
        %v973 = vunpack.c.l.b16 %v880
        %v974 = vunpack.c.h.b16 %v880
        %v975 = vunpack.c.l.b16 %v881
        %v976 = vunpack.c.h.b16 %v881
        %v977 = vunpack.c.l.b16 %v882
        %v978 = vunpack.c.h.b16 %v882
        %v979 = vunpack.c.l.b16 %v883
        %v980 = vunpack.c.h.b16 %v883
        %v981 = vunpack.c.l.b16 %v884
        %v982 = vunpack.c.h.b16 %v884
        %v983 = vunpack.c.l.b16 %v885
        %v984 = vunpack.c.h.b16 %v885
        %v985 = vunpack.c.l.b16 %v886
        %v986 = vunpack.c.h.b16 %v886
        %v987 = vunpack.c.l.b16 %v887
        %v988 = vunpack.c.h.b16 %v887
        %v989 = vunpack.c.l.b16 %v888
        %v990 = vunpack.c.h.b16 %v888
        %v991 = vunpack.c.l.b16 %v889
        %v992 = vunpack.c.h.b16 %v889
        %v993 = vunpack.c.l.b16 %v890
        %v994 = vunpack.c.h.b16 %v890
        %v995 = vunpack.c.l.b16 %v891
        %v996 = vunpack.c.h.b16 %v891
        %v997 = vunpack.c.l.b16 %v892
        %v998 = vunpack.c.h.b16 %v892
        %v999 = vunpack.c.l.b16 %v893
        %v1000 = vunpack.c.h.b16 %v893
        %v1001 = vunpack.c.l.b16 %v894
        %v1002 = vunpack.c.h.b16 %v894
        %v1003 = vpack.c.b16 %v941, %v939
        %v1004 = vpack.c.b16 %v942, %v940
        %v1005 = vpack.c.b16 %v945, %v943
        %v1006 = vpack.c.b16 %v946, %v944
        %v1007 = vpack.c.b16 %v949, %v947
        %v1008 = vpack.c.b16 %v950, %v948
        %v1009 = vpack.c.b16 %v953, %v951
        %v1010 = vpack.c.b16 %v954, %v952
        %v1011 = vpack.c.b16 %v957, %v955
        %v1012 = vpack.c.b16 %v958, %v956
        %v1013 = vpack.c.b16 %v961, %v959
        %v1014 = vpack.c.b16 %v962, %v960
        %v1015 = vpack.c.b16 %v965, %v963
        %v1016 = vpack.c.b16 %v966, %v964
        %v1017 = vpack.c.b16 %v969, %v967
        %v1018 = vpack.c.b16 %v970, %v968
        %v1019 = vpack.c.b16 %v973, %v971
        %v1020 = vpack.c.b16 %v974, %v972
        %v1021 = vpack.c.b16 %v977, %v975
        %v1022 = vpack.c.b16 %v978, %v976
        %v1023 = vpack.c.b16 %v981, %v979
        %v1024 = vpack.c.b16 %v982, %v980
        %v1025 = vpack.c.b16 %v985, %v983
        %v1026 = vpack.c.b16 %v986, %v984
        %v1027 = vpack.c.b16 %v989, %v987
        %v1028 = vpack.c.b16 %v990, %v988
        %v1029 = vpack.c.b16 %v993, %v991
        %v1030 = vpack.c.b16 %v994, %v992
        %v1031 = vpack.c.b16 %v997, %v995
        %v1032 = vpack.c.b16 %v998, %v996
        %v1033 = vpack.c.b16 %v1001, %v999
        %v1034 = vpack.c.b16 %v1002, %v1000
        %1067 = vmatprep.subr.bf16.mxu0 %v1004
        %1068 = vmatpush1.bf16.msra.mxu0 %v1003
        %1069 = vmatprep.subr.bf16.mxu0 %v1006
        %1070 = vmatpush1.bf16.msra.mxu0 %v1005
        %1071 = vmatprep.subr.bf16.mxu0 %v1008
        %1072 = vmatpush1.bf16.msra.mxu0 %v1007
        %1073 = vmatprep.subr.bf16.mxu0 %v1010
        %1074 = vmatpush1.bf16.msra.mxu0 %v1009
        %1075 = vmatprep.subr.bf16.mxu0 %v1012
        %1076 = vmatpush1.bf16.msra.mxu0 %v1011
        %1077 = vmatprep.subr.bf16.mxu0 %v1014
        %1078 = vmatpush1.bf16.msra.mxu0 %v1013
        %1079 = vmatprep.subr.bf16.mxu0 %v1016
        %1080 = vmatpush1.bf16.msra.mxu0 %v1015
        %1081 = vmatprep.subr.bf16.mxu0 %v1018
        %1082 = vmatpush1.bf16.msra.mxu0 %v1017
        %1083 = vmatprep.subr.bf16.mxu0 %v1020
        %1084 = vmatpush1.bf16.msra.mxu0 %v1019
        %1085 = vmatprep.subr.bf16.mxu0 %v1022
        %1086 = vmatpush1.bf16.msra.mxu0 %v1021
        %1087 = vmatprep.subr.bf16.mxu0 %v1024
        %1088 = vmatpush1.bf16.msra.mxu0 %v1023
        %1089 = vmatprep.subr.bf16.mxu0 %v1026
        %1090 = vmatpush1.bf16.msra.mxu0 %v1025
        %1091 = vmatprep.subr.bf16.mxu0 %v1028
        %1092 = vmatpush1.bf16.msra.mxu0 %v1027
        %1093 = vmatprep.subr.bf16.mxu0 %v1030
        %1094 = vmatpush1.bf16.msra.mxu0 %v1029
        %1095 = vmatprep.subr.bf16.mxu0 %v1032
        %1096 = vmatpush1.bf16.msra.mxu0 %v1031
        %1097 = vmatprep.subr.bf16.mxu0 %v1034
        %1098 = vmatpush1.bf16.msra.mxu0 %v1033
        %1099 = vmatprep.mubr.bf16.mxu0 %v848
        %1100 = vmatmul.mubr.bf16.gmra.mrb[0].mxu0 %v847
        %v1101 = vpop.f32.mrb[0].mxu0
        %v1102 = vadd.f32 %v900, %v1101
        %v1103 = vpop.f32.mrb[0].mxu0
        %v1104 = vadd.f32 %v904, %v1103
        %v1105 = vpop.f32.mrb[0].mxu0
        %v1106 = vadd.f32 %v900, %v1105
        %v1107 = vpop.f32.mrb[0].mxu0
        %v1108 = vadd.f32 %v904, %v1107
        %1109 = vmatprep.mubr.bf16.mxu0 %v850
        %1110 = vmatmul.mubr.bf16.gmra.mrb[0].mxu0 %v849
        %v1111 = vpop.f32.mrb[0].mxu0
        %v1112 = vadd.f32 %v900, %v1111
        %v1113 = vpop.f32.mrb[0].mxu0
        %v1114 = vadd.f32 %v904, %v1113
        %v1115 = vpop.f32.mrb[0].mxu0
        %v1116 = vadd.f32 %v900, %v1115
        %v1117 = vpop.f32.mrb[0].mxu0
        %v1118 = vadd.f32 %v904, %v1117
        %1119 = vmatprep.mubr.bf16.mxu0 %v852
        %1120 = vmatmul.mubr.bf16.gmra.mrb[0].mxu0 %v851
        %v1121 = vpop.f32.mrb[0].mxu0
        %v1122 = vadd.f32 %v900, %v1121
        %v1123 = vpop.f32.mrb[0].mxu0
        %v1124 = vadd.f32 %v904, %v1123
        %v1125 = vpop.f32.mrb[0].mxu0
        %v1126 = vadd.f32 %v900, %v1125
        %v1127 = vpop.f32.mrb[0].mxu0
        %v1128 = vadd.f32 %v904, %v1127
        %1129 = vmatprep.mubr.bf16.mxu0 %v854
        %1130 = vmatmul.mubr.bf16.gmra.mrb[0].mxu0 %v853
        %v1131 = vpop.f32.mrb[0].mxu0
        %v1132 = vadd.f32 %v900, %v1131
        %v1133 = vpop.f32.mrb[0].mxu0
        %v1134 = vadd.f32 %v904, %v1133
        %v1135 = vpop.f32.mrb[0].mxu0
        %v1136 = vadd.f32 %v900, %v1135
        %v1137 = vpop.f32.mrb[0].mxu0
        %v1138 = vadd.f32 %v904, %v1137
        %1139 = vmatprep.mubr.bf16.mxu0 %v856
        %1140 = vmatmul.mubr.bf16.gmra.mrb[0].mxu0 %v855
        %v1141 = vpop.f32.mrb[0].mxu0
        %v1142 = vadd.f32 %v900, %v1141
        %v1143 = vpop.f32.mrb[0].mxu0
        %v1144 = vadd.f32 %v904, %v1143
        %v1145 = vpop.f32.mrb[0].mxu0
        %v1146 = vadd.f32 %v900, %v1145
        %v1147 = vpop.f32.mrb[0].mxu0
        %v1148 = vadd.f32 %v904, %v1147
        %1149 = vmatprep.mubr.bf16.mxu0 %v858
        %1150 = vmatmul.mubr.bf16.gmra.mrb[0].mxu0 %v857
        %v1151 = vpop.f32.mrb[0].mxu0
        %v1152 = vadd.f32 %v900, %v1151
        %v1153 = vpop.f32.mrb[0].mxu0
        %v1154 = vadd.f32 %v904, %v1153
        %v1155 = vpop.f32.mrb[0].mxu0
        %v1156 = vadd.f32 %v900, %v1155
        %v1157 = vpop.f32.mrb[0].mxu0
        %v1158 = vadd.f32 %v904, %v1157
        %1159 = vmatprep.mubr.bf16.mxu0 %v860
        %1160 = vmatmul.mubr.bf16.gmra.mrb[0].mxu0 %v859
        %v1161 = vpop.f32.mrb[0].mxu0
        %v1162 = vadd.f32 %v900, %v1161
        %v1163 = vpop.f32.mrb[0].mxu0
        %v1164 = vadd.f32 %v904, %v1163
        %v1165 = vpop.f32.mrb[0].mxu0
        %v1166 = vadd.f32 %v900, %v1165
        %v1167 = vpop.f32.mrb[0].mxu0
        %v1168 = vadd.f32 %v904, %v1167
        %1169 = vmatprep.mubr.bf16.mxu0 %v862
        %1170 = vmatmul.mubr.bf16.gmra.mrb[0].mxu0 %v861
        %v1171 = vpop.f32.mrb[0].mxu0
        %v1172 = vadd.f32 %v900, %v1171
        %v1173 = vpop.f32.mrb[0].mxu0
        %v1174 = vadd.f32 %v904, %v1173
        %v1175 = vpop.f32.mrb[0].mxu0
        %v1176 = vadd.f32 %v900, %v1175
        %v1177 = vpop.f32.mrb[0].mxu0
        %v1178 = vadd.f32 %v904, %v1177
        %1179 = vdwg.mxu0
        %v1180 = vmul.f32 %v1104, 0.5
        %v1181 = vmul.f32 %v1108, 0.5
        %v1182 = vmul.f32 %v1114, 0.5
        %v1183 = vmul.f32 %v1118, 0.5
        %v1184 = vmul.f32 %v1124, 0.5
        %v1185 = vmul.f32 %v1128, 0.5
        %v1186 = vmul.f32 %v1134, 0.5
        %v1187 = vmul.f32 %v1138, 0.5
        %v1188 = vmul.f32 %v1144, 0.5
        %v1189 = vmul.f32 %v1148, 0.5
        %v1190 = vmul.f32 %v1154, 0.5
        %v1191 = vmul.f32 %v1158, 0.5
        %v1192 = vmul.f32 %v1164, 0.5
        %v1193 = vmul.f32 %v1168, 0.5
        %v1194 = vmul.f32 %v1174, 0.5
        %v1195 = vmul.f32 %v1178, 0.5
        %v1196 = vmul.f32 %v1180, 1.442695
        %v1197 = vpow.pop %v1196
        %v1198 = vmul.f32 %v1181, 1.442695
        %v1199 = vpow.pop %v1198
        %v1200 = vmul.f32 %v1182, 1.442695
        %v1201 = vpow.pop %v1200
        %v1202 = vmul.f32 %v1183, 1.442695
        %v1203 = vpow.pop %v1202
        %v1204 = vmul.f32 %v1184, 1.442695
        %v1205 = vpow.pop %v1204
        %v1206 = vmul.f32 %v1185, 1.442695
        %v1207 = vpow.pop %v1206
        %v1208 = vmul.f32 %v1186, 1.442695
        %v1209 = vpow.pop %v1208
        %v1210 = vmul.f32 %v1187, 1.442695
        %v1211 = vpow.pop %v1210
        %v1212 = vmul.f32 %v1188, 1.442695
        %v1213 = vpow.pop %v1212
        %v1214 = vmul.f32 %v1189, 1.442695
        %v1215 = vpow.pop %v1214
        %v1216 = vmul.f32 %v1190, 1.442695
        %v1217 = vpow.pop %v1216
        %v1218 = vmul.f32 %v1191, 1.442695
        %v1219 = vpow.pop %v1218
        %v1220 = vmul.f32 %v1192, 1.442695
        %v1221 = vpow.pop %v1220
        %v1222 = vmul.f32 %v1193, 1.442695
        %v1223 = vpow.pop %v1222
        %v1224 = vmul.f32 %v1194, 1.442695
        %v1225 = vpow.pop %v1224
        %v1226 = vmul.f32 %v1195, 1.442695
        %v1227 = vpow.pop %v1226
        %v1228 = vmul.f32 %v570, %v1197
        %v1229 = vmul.f32 %v571, %v1199
        %v1230 = vmul.f32 %v572, %v1201
        %v1231 = vmul.f32 %v573, %v1203
        %v1232 = vmul.f32 %v574, %v1205
        %v1233 = vmul.f32 %v575, %v1207
        %v1234 = vmul.f32 %v576, %v1209
        %v1235 = vmul.f32 %v577, %v1211
        %v1236 = vmul.f32 %v578, %v1213
        %v1237 = vmul.f32 %v579, %v1215
        %v1238 = vmul.f32 %v580, %v1217
        %v1239 = vmul.f32 %v581, %v1219
        %v1240 = vmul.f32 %v582, %v1221
        %v1241 = vmul.f32 %v583, %v1223
        %v1242 = vmul.f32 %v584, %v1225
        %v1243 = vmul.f32 %v585, %v1227
        %v1244 = vadd.f32 %v1102, %v1228
        %v1245 = vadd.f32 %v1106, %v1229
        %v1246 = vadd.f32 %v1112, %v1230
        %v1247 = vadd.f32 %v1116, %v1231
        %v1248 = vadd.f32 %v1122, %v1232
        %v1249 = vadd.f32 %v1126, %v1233
        %v1250 = vadd.f32 %v1132, %v1234
        %v1251 = vadd.f32 %v1136, %v1235
        %v1252 = vadd.f32 %v1142, %v1236
        %v1253 = vadd.f32 %v1146, %v1237
        %v1254 = vadd.f32 %v1152, %v1238
        %v1255 = vadd.f32 %v1156, %v1239
        %v1256 = vadd.f32 %v1162, %v1240
        %v1257 = vadd.f32 %v1166, %v1241
        %v1258 = vadd.f32 %v1172, %v1242
        %v1259 = vadd.f32 %v1176, %v1243
        %v1260 = vpack.c.bf16 %v1245, %v1244
        %v1261 = vpack.c.bf16 %v1247, %v1246
        %v1262 = vpack.c.bf16 %v1249, %v1248
        %v1263 = vpack.c.bf16 %v1251, %v1250
        %v1264 = vpack.c.bf16 %v1253, %v1252
        %v1265 = vpack.c.bf16 %v1255, %v1254
        %v1266 = vpack.c.bf16 %v1257, %v1256
        %v1267 = vpack.c.bf16 %v1259, %v1258
        %v1268 = vld [vmem:[#allocation10] sm:$0xff]
        %v1269 = vld [vmem:[#allocation10 + $0x8] sm:$0xff]
        %v1270 = vld [vmem:[#allocation10 + $0x10] sm:$0xff]
        %v1271 = vld [vmem:[#allocation10 + $0x18] sm:$0xff]
        %v1272 = vld [vmem:[#allocation10 + $0x20] sm:$0xff]
        %v1273 = vld [vmem:[#allocation10 + $0x28] sm:$0xff]
        %v1274 = vld [vmem:[#allocation10 + $0x30] sm:$0xff]
        %v1275 = vld [vmem:[#allocation10 + $0x38] sm:$0xff]
        %v1276 = vld [vmem:[#allocation10 + $0x40] sm:$0xff]
        %v1277 = vld [vmem:[#allocation10 + $0x48] sm:$0xff]
        %v1278 = vld [vmem:[#allocation10 + $0x50] sm:$0xff]
        %v1279 = vld [vmem:[#allocation10 + $0x58] sm:$0xff]
        %v1280 = vld [vmem:[#allocation10 + $0x60] sm:$0xff]
        %v1281 = vld [vmem:[#allocation10 + $0x68] sm:$0xff]
        %v1282 = vld [vmem:[#allocation10 + $0x70] sm:$0xff]
        %v1283 = vld [vmem:[#allocation10 + $0x78] sm:$0xff]
        %v1284 = vld [vmem:[%s7] sm:$0x3]
        %v1286 = vlaneseq
        %v1287 = vshrl.u32 %v1286, 7
        %v1288 = vsub.s32 0, %v1287
        %v1289 = vrot.slane %v1284, %v1288
        %v1290 = vlaneseq
        %v1291 = vshrl.u32 %v1290, 7
        %v1292 = vsub.s32 1, %v1291
        %v1293 = vrot.slane %v1284, %v1292
        %v1312 = vunpack.c.l.b16 %v1268
        %v1313 = vunpack.c.h.b16 %v1268
        %v1314 = vunpack.c.l.b16 %v1269
        %v1315 = vunpack.c.h.b16 %v1269
        %v1316 = vunpack.c.l.b16 %v1270
        %v1317 = vunpack.c.h.b16 %v1270
        %v1318 = vunpack.c.l.b16 %v1271
        %v1319 = vunpack.c.h.b16 %v1271
        %v1320 = vunpack.c.l.b16 %v1272
        %v1321 = vunpack.c.h.b16 %v1272
        %v1322 = vunpack.c.l.b16 %v1273
        %v1323 = vunpack.c.h.b16 %v1273
        %v1324 = vunpack.c.l.b16 %v1274
        %v1325 = vunpack.c.h.b16 %v1274
        %v1326 = vunpack.c.l.b16 %v1275
        %v1327 = vunpack.c.h.b16 %v1275
        %v1328 = vunpack.c.l.b16 %v1276
        %v1329 = vunpack.c.h.b16 %v1276
        %v1330 = vunpack.c.l.b16 %v1277
        %v1331 = vunpack.c.h.b16 %v1277
        %v1332 = vunpack.c.l.b16 %v1278
        %v1333 = vunpack.c.h.b16 %v1278
        %v1334 = vunpack.c.l.b16 %v1279
        %v1335 = vunpack.c.h.b16 %v1279
        %v1336 = vunpack.c.l.b16 %v1280
        %v1337 = vunpack.c.h.b16 %v1280
        %v1338 = vunpack.c.l.b16 %v1281
        %v1339 = vunpack.c.h.b16 %v1281
        %v1340 = vunpack.c.l.b16 %v1282
        %v1341 = vunpack.c.h.b16 %v1282
        %v1342 = vunpack.c.l.b16 %v1283
        %v1343 = vunpack.c.h.b16 %v1283
        %v1344 = vpack.c.b16 %v1314, %v1312
        %v1345 = vpack.c.b16 %v1315, %v1313
        %v1346 = vpack.c.b16 %v1318, %v1316
        %v1347 = vpack.c.b16 %v1319, %v1317
        %v1348 = vpack.c.b16 %v1322, %v1320
        %v1349 = vpack.c.b16 %v1323, %v1321
        %v1350 = vpack.c.b16 %v1326, %v1324
        %v1351 = vpack.c.b16 %v1327, %v1325
        %v1352 = vpack.c.b16 %v1330, %v1328
        %v1353 = vpack.c.b16 %v1331, %v1329
        %v1354 = vpack.c.b16 %v1334, %v1332
        %v1355 = vpack.c.b16 %v1335, %v1333
        %v1356 = vpack.c.b16 %v1338, %v1336
        %v1357 = vpack.c.b16 %v1339, %v1337
        %v1358 = vpack.c.b16 %v1342, %v1340
        %v1359 = vpack.c.b16 %v1343, %v1341
        %1376 = vmatprep.subr.bf16.mxu0 %v1345
        %1377 = vmatpush1.bf16.msra.mxu0 %v1344
        %1378 = vmatprep.subr.bf16.mxu0 %v1347
        %1379 = vmatpush1.bf16.msra.mxu0 %v1346
        %1380 = vmatprep.subr.bf16.mxu0 %v1349
        %1381 = vmatpush1.bf16.msra.mxu0 %v1348
        %1382 = vmatprep.subr.bf16.mxu0 %v1351
        %1383 = vmatpush1.bf16.msra.mxu0 %v1350
        %1384 = vmatprep.subr.bf16.mxu0 %v1353
        %1385 = vmatpush1.bf16.msra.mxu0 %v1352
        %1386 = vmatprep.subr.bf16.mxu0 %v1355
        %1387 = vmatpush1.bf16.msra.mxu0 %v1354
        %1388 = vmatprep.subr.bf16.mxu0 %v1357
        %1389 = vmatpush1.bf16.msra.mxu0 %v1356
        %1390 = vmatprep.subr.bf16.mxu0 %v1359
        %1391 = vmatpush1.bf16.msra.mxu0 %v1358
        %1392 = vmatprep.subr.bf16.mxu0 0
        %1393 = vmatpush1.bf16.msra.mxu0 0
        %1394 = vmatprep.subr.bf16.mxu0 0
        %1395 = vmatpush1.bf16.msra.mxu0 0
        %1396 = vmatprep.subr.bf16.mxu0 0
        %1397 = vmatpush1.bf16.msra.mxu0 0
        %1398 = vmatprep.subr.bf16.mxu0 0
        %1399 = vmatpush1.bf16.msra.mxu0 0
        %1400 = vmatprep.subr.bf16.mxu0 0
        %1401 = vmatpush1.bf16.msra.mxu0 0
        %1402 = vmatprep.subr.bf16.mxu0 0
        %1403 = vmatpush1.bf16.msra.mxu0 0
        %1404 = vmatprep.subr.bf16.mxu0 0
        %1405 = vmatpush1.bf16.msra.mxu0 0
        %1406 = vmatprep.subr.bf16.mxu0 0
        %1407 = vmatpush1.bf16.msra.mxu0 0
        %1408 = vmatprep.mubr.bf16.mxu0 0
        %1409 = vmatmul.mubr.bf16.gmra.mrb[0].mxu0 %v1260
        %v1410 = vpop.f32.mrb[0].mxu0
        %v1411 = vadd.f32 %v1289, %v1410
        %v1412 = vpop.f32.mrb[0].mxu0
        %v1413 = vadd.f32 %v1293, %v1412
        %v1414 = vpop.f32.mrb[0].mxu0
        %v1415 = vadd.f32 %v1289, %v1414
        %v1416 = vpop.f32.mrb[0].mxu0
        %v1417 = vadd.f32 %v1293, %v1416
        %1418 = vmatprep.mubr.bf16.mxu0 0
        %1419 = vmatmul.mubr.bf16.gmra.mrb[0].mxu0 %v1261
        %v1420 = vpop.f32.mrb[0].mxu0
        %v1421 = vadd.f32 %v1289, %v1420
        %v1422 = vpop.f32.mrb[0].mxu0
        %v1423 = vadd.f32 %v1293, %v1422
        %v1424 = vpop.f32.mrb[0].mxu0
        %v1425 = vadd.f32 %v1289, %v1424
        %v1426 = vpop.f32.mrb[0].mxu0
        %v1427 = vadd.f32 %v1293, %v1426
        %1428 = vmatprep.mubr.bf16.mxu0 0
        %1429 = vmatmul.mubr.bf16.gmra.mrb[0].mxu0 %v1262
        %v1430 = vpop.f32.mrb[0].mxu0
        %v1431 = vadd.f32 %v1289, %v1430
        %v1432 = vpop.f32.mrb[0].mxu0
        %v1433 = vadd.f32 %v1293, %v1432
        %v1434 = vpop.f32.mrb[0].mxu0
        %v1435 = vadd.f32 %v1289, %v1434
        %v1436 = vpop.f32.mrb[0].mxu0
        %v1437 = vadd.f32 %v1293, %v1436
        %1438 = vmatprep.mubr.bf16.mxu0 0
        %1439 = vmatmul.mubr.bf16.gmra.mrb[0].mxu0 %v1263
        %v1440 = vpop.f32.mrb[0].mxu0
        %v1441 = vadd.f32 %v1289, %v1440
        %v1442 = vpop.f32.mrb[0].mxu0
        %v1443 = vadd.f32 %v1293, %v1442
        %v1444 = vpop.f32.mrb[0].mxu0
        %v1445 = vadd.f32 %v1289, %v1444
        %v1446 = vpop.f32.mrb[0].mxu0
        %v1447 = vadd.f32 %v1293, %v1446
        %1448 = vmatprep.mubr.bf16.mxu0 0
        %1449 = vmatmul.mubr.bf16.gmra.mrb[0].mxu0 %v1264
        %v1450 = vpop.f32.mrb[0].mxu0
        %v1451 = vadd.f32 %v1289, %v1450
        %v1452 = vpop.f32.mrb[0].mxu0
        %v1453 = vadd.f32 %v1293, %v1452
        %v1454 = vpop.f32.mrb[0].mxu0
        %v1455 = vadd.f32 %v1289, %v1454
        %v1456 = vpop.f32.mrb[0].mxu0
        %v1457 = vadd.f32 %v1293, %v1456
        %1458 = vmatprep.mubr.bf16.mxu0 0
        %1459 = vmatmul.mubr.bf16.gmra.mrb[0].mxu0 %v1265
        %v1460 = vpop.f32.mrb[0].mxu0
        %v1461 = vadd.f32 %v1289, %v1460
        %v1462 = vpop.f32.mrb[0].mxu0
        %v1463 = vadd.f32 %v1293, %v1462
        %v1464 = vpop.f32.mrb[0].mxu0
        %v1465 = vadd.f32 %v1289, %v1464
        %v1466 = vpop.f32.mrb[0].mxu0
        %v1467 = vadd.f32 %v1293, %v1466
        %1468 = vmatprep.mubr.bf16.mxu0 0
        %1469 = vmatmul.mubr.bf16.gmra.mrb[0].mxu0 %v1266
        %v1470 = vpop.f32.mrb[0].mxu0
        %v1471 = vadd.f32 %v1289, %v1470
        %v1472 = vpop.f32.mrb[0].mxu0
        %v1473 = vadd.f32 %v1293, %v1472
        %v1474 = vpop.f32.mrb[0].mxu0
        %v1475 = vadd.f32 %v1289, %v1474
        %v1476 = vpop.f32.mrb[0].mxu0
        %v1477 = vadd.f32 %v1293, %v1476
        %1478 = vmatprep.mubr.bf16.mxu0 0
        %1479 = vmatmul.mubr.bf16.gmra.mrb[0].mxu0 %v1267
        %v1480 = vpop.f32.mrb[0].mxu0
        %v1481 = vadd.f32 %v1289, %v1480
        %v1482 = vpop.f32.mrb[0].mxu0
        %v1483 = vadd.f32 %v1293, %v1482
        %v1484 = vpop.f32.mrb[0].mxu0
        %v1485 = vadd.f32 %v1289, %v1484
        %v1486 = vpop.f32.mrb[0].mxu0
        %v1487 = vadd.f32 %v1293, %v1486
        %1488 = vdwg.mxu0
        %v1489 = vmax.f32 %v1411, 0.0
        %v1490 = vmax.f32 %v1413, 0.0
        %v1491 = vmax.f32 %v1415, 0.0
        %v1492 = vmax.f32 %v1417, 0.0
        %v1493 = vmax.f32 %v1421, 0.0
        %v1494 = vmax.f32 %v1423, 0.0
        %v1495 = vmax.f32 %v1425, 0.0
        %v1496 = vmax.f32 %v1427, 0.0
        %v1497 = vmax.f32 %v1431, 0.0
        %v1498 = vmax.f32 %v1433, 0.0
        %v1499 = vmax.f32 %v1435, 0.0
        %v1500 = vmax.f32 %v1437, 0.0
        %v1501 = vmax.f32 %v1441, 0.0
        %v1502 = vmax.f32 %v1443, 0.0
        %v1503 = vmax.f32 %v1445, 0.0
        %v1504 = vmax.f32 %v1447, 0.0
        %v1505 = vmax.f32 %v1451, 0.0
        %v1506 = vmax.f32 %v1453, 0.0
        %v1507 = vmax.f32 %v1455, 0.0
        %v1508 = vmax.f32 %v1457, 0.0
        %v1509 = vmax.f32 %v1461, 0.0
        %v1510 = vmax.f32 %v1463, 0.0
        %v1511 = vmax.f32 %v1465, 0.0
        %v1512 = vmax.f32 %v1467, 0.0
        %v1513 = vmax.f32 %v1471, 0.0
        %v1514 = vmax.f32 %v1473, 0.0
        %v1515 = vmax.f32 %v1475, 0.0
        %v1516 = vmax.f32 %v1477, 0.0
        %v1517 = vmax.f32 %v1481, 0.0
        %v1518 = vmax.f32 %v1483, 0.0
        %v1519 = vmax.f32 %v1485, 0.0
        %v1520 = vmax.f32 %v1487, 0.0
        %v1521 = vpack.c.bf16 %v1491, %v1489
        %v1522 = vpack.c.bf16 %v1492, %v1490
        %v1523 = vpack.c.bf16 %v1495, %v1493
        %v1524 = vpack.c.bf16 %v1496, %v1494
        %v1525 = vpack.c.bf16 %v1499, %v1497
        %v1526 = vpack.c.bf16 %v1500, %v1498
        %v1527 = vpack.c.bf16 %v1503, %v1501
        %v1528 = vpack.c.bf16 %v1504, %v1502
        %v1529 = vpack.c.bf16 %v1507, %v1505
        %v1530 = vpack.c.bf16 %v1508, %v1506
        %v1531 = vpack.c.bf16 %v1511, %v1509
        %v1532 = vpack.c.bf16 %v1512, %v1510
        %v1533 = vpack.c.bf16 %v1515, %v1513
        %v1534 = vpack.c.bf16 %v1516, %v1514
        %v1535 = vpack.c.bf16 %v1519, %v1517
        %v1536 = vpack.c.bf16 %v1520, %v1518
        %v1537 = vld [vmem:[#allocation11] sm:$0xf]
        %v1538 = vld [vmem:[#allocation11 + $0x4] sm:$0xf]
        %v1539 = vld [vmem:[#allocation11 + $0x8] sm:$0xf]
        %v1540 = vld [vmem:[#allocation11 + $0xc] sm:$0xf]
        %v1541 = vld [vmem:[#allocation11 + $0x10] sm:$0xf]
        %v1542 = vld [vmem:[#allocation11 + $0x14] sm:$0xf]
        %v1543 = vld [vmem:[#allocation11 + $0x18] sm:$0xf]
        %v1544 = vld [vmem:[#allocation11 + $0x1c] sm:$0xf]
        %v1545 = vld [vmem:[#allocation11 + $0x20] sm:$0xf]
        %v1546 = vld [vmem:[#allocation11 + $0x24] sm:$0xf]
        %v1547 = vld [vmem:[#allocation11 + $0x28] sm:$0xf]
        %v1548 = vld [vmem:[#allocation11 + $0x2c] sm:$0xf]
        %v1549 = vld [vmem:[#allocation11 + $0x30] sm:$0xf]
        %v1550 = vld [vmem:[#allocation11 + $0x34] sm:$0xf]
        %v1551 = vld [vmem:[#allocation11 + $0x38] sm:$0xf]
        %v1552 = vld [vmem:[#allocation11 + $0x3c] sm:$0xf]
        %v1553 = vld [vmem:[#allocation11 + $0x40] sm:$0xf]
        %v1554 = vld [vmem:[#allocation11 + $0x44] sm:$0xf]
        %v1555 = vld [vmem:[#allocation11 + $0x48] sm:$0xf]
        %v1556 = vld [vmem:[#allocation11 + $0x4c] sm:$0xf]
        %v1557 = vld [vmem:[#allocation11 + $0x50] sm:$0xf]
        %v1558 = vld [vmem:[#allocation11 + $0x54] sm:$0xf]
        %v1559 = vld [vmem:[#allocation11 + $0x58] sm:$0xf]
        %v1560 = vld [vmem:[#allocation11 + $0x5c] sm:$0xf]
        %v1561 = vld [vmem:[#allocation11 + $0x60] sm:$0xf]
        %v1562 = vld [vmem:[#allocation11 + $0x64] sm:$0xf]
        %v1563 = vld [vmem:[#allocation11 + $0x68] sm:$0xf]
        %v1564 = vld [vmem:[#allocation11 + $0x6c] sm:$0xf]
        %v1565 = vld [vmem:[#allocation11 + $0x70] sm:$0xf]
        %v1566 = vld [vmem:[#allocation11 + $0x74] sm:$0xf]
        %v1567 = vld [vmem:[#allocation11 + $0x78] sm:$0xf]
        %v1568 = vld [vmem:[#allocation11 + $0x7c] sm:$0xf]
        %v1569 = vld [vmem:[%s9] sm:$0x1]
        %v1571 = vlaneseq
        %v1572 = vshrl.u32 %v1571, 7
        %v1573 = vsub.s32 0, %v1572
        %v1574 = vrot.slane %v1569, %v1573
        %v1608 = vunpack.c.l.b16 %v1537
        %v1609 = vunpack.c.l.b16 %v1538
        %v1610 = vunpack.c.l.b16 %v1539
        %v1611 = vunpack.c.l.b16 %v1540
        %v1612 = vunpack.c.l.b16 %v1541
        %v1613 = vunpack.c.l.b16 %v1542
        %v1614 = vunpack.c.l.b16 %v1543
        %v1615 = vunpack.c.l.b16 %v1544
        %v1616 = vunpack.c.l.b16 %v1545
        %v1617 = vunpack.c.l.b16 %v1546
        %v1618 = vunpack.c.l.b16 %v1547
        %v1619 = vunpack.c.l.b16 %v1548
        %v1620 = vunpack.c.l.b16 %v1549
        %v1621 = vunpack.c.l.b16 %v1550
        %v1622 = vunpack.c.l.b16 %v1551
        %v1623 = vunpack.c.l.b16 %v1552
        %v1624 = vunpack.c.l.b16 %v1553
        %v1625 = vunpack.c.l.b16 %v1554
        %v1626 = vunpack.c.l.b16 %v1555
        %v1627 = vunpack.c.l.b16 %v1556
        %v1628 = vunpack.c.l.b16 %v1557
        %v1629 = vunpack.c.l.b16 %v1558
        %v1630 = vunpack.c.l.b16 %v1559
        %v1631 = vunpack.c.l.b16 %v1560
        %v1632 = vunpack.c.l.b16 %v1561
        %v1633 = vunpack.c.l.b16 %v1562
        %v1634 = vunpack.c.l.b16 %v1563
        %v1635 = vunpack.c.l.b16 %v1564
        %v1636 = vunpack.c.l.b16 %v1565
        %v1637 = vunpack.c.l.b16 %v1566
        %v1638 = vunpack.c.l.b16 %v1567
        %v1639 = vunpack.c.l.b16 %v1568
        %v1640 = vpack.c.b16 %v1609, %v1608
        %v1641 = vpack.c.b16 %v1611, %v1610
        %v1642 = vpack.c.b16 %v1613, %v1612
        %v1643 = vpack.c.b16 %v1615, %v1614
        %v1644 = vpack.c.b16 %v1617, %v1616
        %v1645 = vpack.c.b16 %v1619, %v1618
        %v1646 = vpack.c.b16 %v1621, %v1620
        %v1647 = vpack.c.b16 %v1623, %v1622
        %v1648 = vpack.c.b16 %v1625, %v1624
        %v1649 = vpack.c.b16 %v1627, %v1626
        %v1650 = vpack.c.b16 %v1629, %v1628
        %v1651 = vpack.c.b16 %v1631, %v1630
        %v1652 = vpack.c.b16 %v1633, %v1632
        %v1653 = vpack.c.b16 %v1635, %v1634
        %v1654 = vpack.c.b16 %v1637, %v1636
        %v1655 = vpack.c.b16 %v1639, %v1638
        %1672 = vmatprep.subr.bf16.mxu0 0
        %1673 = vmatpush1.bf16.msra.mxu0 %v1640
        %1674 = vmatprep.subr.bf16.mxu0 0
        %1675 = vmatpush1.bf16.msra.mxu0 %v1641
        %1676 = vmatprep.subr.bf16.mxu0 0
        %1677 = vmatpush1.bf16.msra.mxu0 %v1642
        %1678 = vmatprep.subr.bf16.mxu0 0
        %1679 = vmatpush1.bf16.msra.mxu0 %v1643
        %1680 = vmatprep.subr.bf16.mxu0 0
        %1681 = vmatpush1.bf16.msra.mxu0 %v1644
        %1682 = vmatprep.subr.bf16.mxu0 0
        %1683 = vmatpush1.bf16.msra.mxu0 %v1645
        %1684 = vmatprep.subr.bf16.mxu0 0
        %1685 = vmatpush1.bf16.msra.mxu0 %v1646
        %1686 = vmatprep.subr.bf16.mxu0 0
        %1687 = vmatpush1.bf16.msra.mxu0 %v1647
        %1688 = vmatprep.subr.bf16.mxu0 0
        %1689 = vmatpush1.bf16.msra.mxu0 %v1648
        %1690 = vmatprep.subr.bf16.mxu0 0
        %1691 = vmatpush1.bf16.msra.mxu0 %v1649
        %1692 = vmatprep.subr.bf16.mxu0 0
        %1693 = vmatpush1.bf16.msra.mxu0 %v1650
        %1694 = vmatprep.subr.bf16.mxu0 0
        %1695 = vmatpush1.bf16.msra.mxu0 %v1651
        %1696 = vmatprep.subr.bf16.mxu0 0
        %1697 = vmatpush1.bf16.msra.mxu0 %v1652
        %1698 = vmatprep.subr.bf16.mxu0 0
        %1699 = vmatpush1.bf16.msra.mxu0 %v1653
        %1700 = vmatprep.subr.bf16.mxu0 0
        %1701 = vmatpush1.bf16.msra.mxu0 %v1654
        %1702 = vmatprep.subr.bf16.mxu0 0
        %1703 = vmatpush1.bf16.msra.mxu0 %v1655
        %1704 = vmatprep.mubr.bf16.mxu0 %v1522
        %1705 = vmatmul.mubr.bf16.gmra.mrb[0].mxu0 %v1521
        %v1706 = vpop.f32.mrb[0].mxu0
        %v1707 = vadd.f32 %v1574, %v1706
        %v1708 = vpop.f32.mrb[0].mxu0
        %v1709 = vpop.f32.mrb[0].mxu0
        %v1710 = vadd.f32 %v1574, %v1709
        %v1711 = vpop.f32.mrb[0].mxu0
        %1712 = vmatprep.mubr.bf16.mxu0 %v1524
        %1713 = vmatmul.mubr.bf16.gmra.mrb[0].mxu0 %v1523
        %v1714 = vpop.f32.mrb[0].mxu0
        %v1715 = vadd.f32 %v1574, %v1714
        %v1716 = vpop.f32.mrb[0].mxu0
        %v1717 = vpop.f32.mrb[0].mxu0
        %v1718 = vadd.f32 %v1574, %v1717
        %v1719 = vpop.f32.mrb[0].mxu0
        %1720 = vmatprep.mubr.bf16.mxu0 %v1526
        %1721 = vmatmul.mubr.bf16.gmra.mrb[0].mxu0 %v1525
        %v1722 = vpop.f32.mrb[0].mxu0
        %v1723 = vadd.f32 %v1574, %v1722
        %v1724 = vpop.f32.mrb[0].mxu0
        %v1725 = vpop.f32.mrb[0].mxu0
        %v1726 = vadd.f32 %v1574, %v1725
        %v1727 = vpop.f32.mrb[0].mxu0
        %1728 = vmatprep.mubr.bf16.mxu0 %v1528
        %1729 = vmatmul.mubr.bf16.gmra.mrb[0].mxu0 %v1527
        %v1730 = vpop.f32.mrb[0].mxu0
        %v1731 = vadd.f32 %v1574, %v1730
        %v1732 = vpop.f32.mrb[0].mxu0
        %v1733 = vpop.f32.mrb[0].mxu0
        %v1734 = vadd.f32 %v1574, %v1733
        %v1735 = vpop.f32.mrb[0].mxu0
        %1736 = vmatprep.mubr.bf16.mxu0 %v1530
        %1737 = vmatmul.mubr.bf16.gmra.mrb[0].mxu0 %v1529
        %v1738 = vpop.f32.mrb[0].mxu0
        %v1739 = vadd.f32 %v1574, %v1738
        %v1740 = vpop.f32.mrb[0].mxu0
        %v1741 = vpop.f32.mrb[0].mxu0
        %v1742 = vadd.f32 %v1574, %v1741
        %v1743 = vpop.f32.mrb[0].mxu0
        %1744 = vmatprep.mubr.bf16.mxu0 %v1532
        %1745 = vmatmul.mubr.bf16.gmra.mrb[0].mxu0 %v1531
        %v1746 = vpop.f32.mrb[0].mxu0
        %v1747 = vadd.f32 %v1574, %v1746
        %v1748 = vpop.f32.mrb[0].mxu0
        %v1749 = vpop.f32.mrb[0].mxu0
        %v1750 = vadd.f32 %v1574, %v1749
        %v1751 = vpop.f32.mrb[0].mxu0
        %1752 = vmatprep.mubr.bf16.mxu0 %v1534
        %1753 = vmatmul.mubr.bf16.gmra.mrb[0].mxu0 %v1533
        %v1754 = vpop.f32.mrb[0].mxu0
        %v1755 = vadd.f32 %v1574, %v1754
        %v1756 = vpop.f32.mrb[0].mxu0
        %v1757 = vpop.f32.mrb[0].mxu0
        %v1758 = vadd.f32 %v1574, %v1757
        %v1759 = vpop.f32.mrb[0].mxu0
        %1760 = vmatprep.mubr.bf16.mxu0 %v1536
        %1761 = vmatmul.mubr.bf16.gmra.mrb[0].mxu0 %v1535
        %v1762 = vpop.f32.mrb[0].mxu0
        %v1763 = vadd.f32 %v1574, %v1762
        %v1764 = vpop.f32.mrb[0].mxu0
        %v1765 = vpop.f32.mrb[0].mxu0
        %v1766 = vadd.f32 %v1574, %v1765
        %v1767 = vpop.f32.mrb[0].mxu0
        %1768 = vdwg.mxu0
        %v1769 = vxor.u32 %v1707, 2147483648
        %v1770 = vxor.u32 %v1710, 2147483648
        %v1771 = vxor.u32 %v1715, 2147483648
        %v1772 = vxor.u32 %v1718, 2147483648
        %v1773 = vxor.u32 %v1723, 2147483648
        %v1774 = vxor.u32 %v1726, 2147483648
        %v1775 = vxor.u32 %v1731, 2147483648
        %v1776 = vxor.u32 %v1734, 2147483648
        %v1777 = vxor.u32 %v1739, 2147483648
        %v1778 = vxor.u32 %v1742, 2147483648
        %v1779 = vxor.u32 %v1747, 2147483648
        %v1780 = vxor.u32 %v1750, 2147483648
        %v1781 = vxor.u32 %v1755, 2147483648
        %v1782 = vxor.u32 %v1758, 2147483648
        %v1783 = vxor.u32 %v1763, 2147483648
        %v1784 = vxor.u32 %v1766, 2147483648
        %v1785 = vmul.f32 %v1769, 1.442695
        %v1786 = vpow.pop %v1785
        %v1787 = vmul.f32 %v1770, 1.442695
        %v1788 = vpow.pop %v1787
        %v1789 = vmul.f32 %v1771, 1.442695
        %v1790 = vpow.pop %v1789
        %v1791 = vmul.f32 %v1772, 1.442695
        %v1792 = vpow.pop %v1791
        %v1793 = vmul.f32 %v1773, 1.442695
        %v1794 = vpow.pop %v1793
        %v1795 = vmul.f32 %v1774, 1.442695
        %v1796 = vpow.pop %v1795
        %v1797 = vmul.f32 %v1775, 1.442695
        %v1798 = vpow.pop %v1797
        %v1799 = vmul.f32 %v1776, 1.442695
        %v1800 = vpow.pop %v1799
        %v1801 = vmul.f32 %v1777, 1.442695
        %v1802 = vpow.pop %v1801
        %v1803 = vmul.f32 %v1778, 1.442695
        %v1804 = vpow.pop %v1803
        %v1805 = vmul.f32 %v1779, 1.442695
        %v1806 = vpow.pop %v1805
        %v1807 = vmul.f32 %v1780, 1.442695
        %v1808 = vpow.pop %v1807
        %v1809 = vmul.f32 %v1781, 1.442695
        %v1810 = vpow.pop %v1809
        %v1811 = vmul.f32 %v1782, 1.442695
        %v1812 = vpow.pop %v1811
        %v1813 = vmul.f32 %v1783, 1.442695
        %v1814 = vpow.pop %v1813
        %v1815 = vmul.f32 %v1784, 1.442695
        %v1816 = vpow.pop %v1815
        %v1817 = vadd.f32 %v1786, 1.0
        %v1818 = vadd.f32 %v1788, 1.0
        %v1819 = vadd.f32 %v1790, 1.0
        %v1820 = vadd.f32 %v1792, 1.0
        %v1821 = vadd.f32 %v1794, 1.0
        %v1822 = vadd.f32 %v1796, 1.0
        %v1823 = vadd.f32 %v1798, 1.0
        %v1824 = vadd.f32 %v1800, 1.0
        %v1825 = vadd.f32 %v1802, 1.0
        %v1826 = vadd.f32 %v1804, 1.0
        %v1827 = vadd.f32 %v1806, 1.0
        %v1828 = vadd.f32 %v1808, 1.0
        %v1829 = vadd.f32 %v1810, 1.0
        %v1830 = vadd.f32 %v1812, 1.0
        %v1831 = vadd.f32 %v1814, 1.0
        %v1832 = vadd.f32 %v1816, 1.0
        %v1833 = vrcp.pop %v1817
        %v1834 = vmul.f32 1.0, %v1833
        %v1835 = vrcp.pop %v1818
        %v1836 = vmul.f32 1.0, %v1835
        %v1837 = vrcp.pop %v1819
        %v1838 = vmul.f32 1.0, %v1837
        %v1839 = vrcp.pop %v1820
        %v1840 = vmul.f32 1.0, %v1839
        %v1841 = vrcp.pop %v1821
        %v1842 = vmul.f32 1.0, %v1841
        %v1843 = vrcp.pop %v1822
        %v1844 = vmul.f32 1.0, %v1843
        %v1845 = vrcp.pop %v1823
        %v1846 = vmul.f32 1.0, %v1845
        %v1847 = vrcp.pop %v1824
        %v1848 = vmul.f32 1.0, %v1847
        %v1849 = vrcp.pop %v1825
        %v1850 = vmul.f32 1.0, %v1849
        %v1851 = vrcp.pop %v1826
        %v1852 = vmul.f32 1.0, %v1851
        %v1853 = vrcp.pop %v1827
        %v1854 = vmul.f32 1.0, %v1853
        %v1855 = vrcp.pop %v1828
        %v1856 = vmul.f32 1.0, %v1855
        %v1857 = vrcp.pop %v1829
        %v1858 = vmul.f32 1.0, %v1857
        %v1859 = vrcp.pop %v1830
        %v1860 = vmul.f32 1.0, %v1859
        %v1861 = vrcp.pop %v1831
        %v1862 = vmul.f32 1.0, %v1861
        %v1863 = vrcp.pop %v1832
        %v1864 = vmul.f32 1.0, %v1863
        %1865 = vst [vmem:[%s533] sm:$0xff] %v1834
        %1866 = vst [vmem:[%s533 + $0x8] sm:$0xff] %v1836
        %1867 = vst [vmem:[%s533 + $0x10] sm:$0xff] %v1838
        %1868 = vst [vmem:[%s533 + $0x18] sm:$0xff] %v1840
        %1869 = vst [vmem:[%s533 + $0x20] sm:$0xff] %v1842
        %1870 = vst [vmem:[%s533 + $0x28] sm:$0xff] %v1844
        %1871 = vst [vmem:[%s533 + $0x30] sm:$0xff] %v1846
        %1872 = vst [vmem:[%s533 + $0x38] sm:$0xff] %v1848
        %1873 = vst [vmem:[%s533 + $0x40] sm:$0xff] %v1850
        %1874 = vst [vmem:[%s533 + $0x48] sm:$0xff] %v1852
        %1875 = vst [vmem:[%s533 + $0x50] sm:$0xff] %v1854
        %1876 = vst [vmem:[%s533 + $0x58] sm:$0xff] %v1856
        %1877 = vst [vmem:[%s533 + $0x60] sm:$0xff] %v1858
        %1878 = vst [vmem:[%s533 + $0x68] sm:$0xff] %v1860
        %1879 = vst [vmem:[%s533 + $0x70] sm:$0xff] %v1862
        %1880 = vst [vmem:[%s533 + $0x78] sm:$0xff] %v1864
        %1881 = vst [vmem:[%s540] sm:$0xff] %v1102
        %1882 = vst [vmem:[%s540 + $0x8] sm:$0xff] %v1106
        %1883 = vst [vmem:[%s540 + $0x10] sm:$0xff] %v1112
        %1884 = vst [vmem:[%s540 + $0x18] sm:$0xff] %v1116
        %1885 = vst [vmem:[%s540 + $0x20] sm:$0xff] %v1122
        %1886 = vst [vmem:[%s540 + $0x28] sm:$0xff] %v1126
        %1887 = vst [vmem:[%s540 + $0x30] sm:$0xff] %v1132
        %1888 = vst [vmem:[%s540 + $0x38] sm:$0xff] %v1136
        %1889 = vst [vmem:[%s540 + $0x40] sm:$0xff] %v1142
        %1890 = vst [vmem:[%s540 + $0x48] sm:$0xff] %v1146
        %1891 = vst [vmem:[%s540 + $0x50] sm:$0xff] %v1152
        %1892 = vst [vmem:[%s540 + $0x58] sm:$0xff] %v1156
        %1893 = vst [vmem:[%s540 + $0x60] sm:$0xff] %v1162
        %1894 = vst [vmem:[%s540 + $0x68] sm:$0xff] %v1166
        %1895 = vst [vmem:[%s540 + $0x70] sm:$0xff] %v1172
        %1896 = vst [vmem:[%s540 + $0x78] sm:$0xff] %v1176
        %1897 = vst [vmem:[%s547] sm:$0xff] %v1104
        %1898 = vst [vmem:[%s547 + $0x8] sm:$0xff] %v1108
        %1899 = vst [vmem:[%s547 + $0x10] sm:$0xff] %v1114
        %1900 = vst [vmem:[%s547 + $0x18] sm:$0xff] %v1118
        %1901 = vst [vmem:[%s547 + $0x20] sm:$0xff] %v1124
        %1902 = vst [vmem:[%s547 + $0x28] sm:$0xff] %v1128
        %1903 = vst [vmem:[%s547 + $0x30] sm:$0xff] %v1134
        %1904 = vst [vmem:[%s547 + $0x38] sm:$0xff] %v1138
        %1905 = vst [vmem:[%s547 + $0x40] sm:$0xff] %v1144
        %1906 = vst [vmem:[%s547 + $0x48] sm:$0xff] %v1148
        %1907 = vst [vmem:[%s547 + $0x50] sm:$0xff] %v1154
        %1908 = vst [vmem:[%s547 + $0x58] sm:$0xff] %v1158
        %1909 = vst [vmem:[%s547 + $0x60] sm:$0xff] %v1164
        %1910 = vst [vmem:[%s547 + $0x68] sm:$0xff] %v1168
        %1911 = vst [vmem:[%s547 + $0x70] sm:$0xff] %v1174
        %1912 = vst [vmem:[%s547 + $0x78] sm:$0xff] %v1178
        %s1913 = sand.u32 %s266, 1
        %s1914 = scalar_lea.sflag [#allocation4], %s1913
        %s1915 = sand.u32 %s266, 1
        %s1916 = smul.addr %s1915, 128
        %s1917 = scalar_lea.vmem [#allocation13], %s1916
        %s1918 = sand.u32 %s38, 1
        %s1919 = scalar_lea.sflag [#allocation15], %s1918
        %s1920 = sand.u32 %s292, 1
        %s1921 = smul.addr %s1920, 128
        %s1922 = scalar_lea.vmem [#allocation14], %s1921
        %s1923 = sand.u32 %s38, 1
        %s1924 = scalar_lea.sflag [#allocation15], %s1923
        %s1925 = sand.u32 %s318, 1
        %s1926 = smul.addr %s1925, 128
        %s1927 = scalar_lea.vmem [#allocation16], %s1926
        // Predicated region
        $region85: #{vae_forward.1} parent=59 // pred_check
          %p1928 = pneg %p276
        $region86: #{vae_forward.1} parent=59 // pred_check_branch
          %1930 = sbr.rel (%p1928) target = $region88
        $region87: #{vae_forward.1} parent=59 // pred_region
          %s1931 = smul.u32 16, %s38
          %s1933 = ssub.s32 2048, 2048
          %1934 = vsyncadd %s1914, %s1933
          %s1935 = smul.addr %s1931, 128
          %s1936 = scalar_lea.hbm %s10, %s1935
          %s1937 = sshll.u32 %s1917, 4
          %s1938 = int_to_ptr.vmem [resolvable:$true] %s1937
          %1943 = dma.vmem_to_hbm [thread:$0]  %s1938, 2048, %s1936, %s1914, 128, 128, 8
        $region88: #{vae_forward.1} parent=59 // pred_fallthru
          _
        // Predicated region
        $region89: #{vae_forward.1} parent=59 // pred_check
          %p1944 = pneg %p302
        $region90: #{vae_forward.1} parent=59 // pred_check_branch
          %1946 = sbr.rel (%p1944) target = $region92
        $region91: #{vae_forward.1} parent=59 // pred_region
          %s1947 = smul.u32 16, %s38
          %s1949 = ssub.s32 2048, 2048
          %1950 = vsyncadd %s1919, %s1949
          %s1951 = smul.addr %s1947, 128
          %s1952 = scalar_lea.hbm %s11, %s1951
          %s1953 = sshll.u32 %s1922, 4
          %s1954 = int_to_ptr.vmem [resolvable:$true] %s1953
          %1959 = dma.vmem_to_hbm [thread:$0]  %s1954, 2048, %s1952, %s1919, 128, 128, 8
        $region92: #{vae_forward.1} parent=59 // pred_fallthru
          _
        // Predicated region
        $region93: #{vae_forward.1} parent=59 // pred_check
          %p1960 = pneg %p328
        $region94: #{vae_forward.1} parent=59 // pred_check_branch
          %1962 = sbr.rel (%p1960) target = $region96
        $region95: #{vae_forward.1} parent=59 // pred_region
          %s1963 = smul.u32 16, %s38
          %s1965 = ssub.s32 2048, 2048
          %1966 = vsyncadd %s1924, %s1965
          %s1967 = smul.addr %s1963, 128
          %s1968 = scalar_lea.hbm %s12, %s1967
          %s1969 = sshll.u32 %s1927, 4
          %s1970 = int_to_ptr.vmem [resolvable:$true] %s1969
          %1975 = dma.vmem_to_hbm [thread:$0]  %s1970, 2048, %s1968, %s1924, 128, 128, 8
        $region96: #{vae_forward.1} parent=59 // pred_fallthru
          _
      $region60: #{vae_forward.1} parent=5 // pred_fallthru
        _
      %p1976 = scmp.le.s32.totalorder 2, %s33
      // Predicated region
      $region97: #{vae_forward.1} parent=5 // pred_check
        %p1977 = pneg %p1976
      $region98: #{vae_forward.1} parent=5 // pred_check_branch
        %1979 = sbr.rel (%p1977) target = $region100
      $region99: #{vae_forward.1} parent=5 // pred_region
        %s1980 = ssub.s32 %s33, 2
        // Predicated region
        $region101: #{vae_forward.1} parent=99 // pred_check
          %p1981 = pneg %p282
        $region102: #{vae_forward.1} parent=99 // pred_check_branch
          %1983 = sbr.rel (%p1981) target = $region104
        $region103: #{vae_forward.1} parent=99 // pred_region
          %s1984 = sand.u32 %s267, 1
          %s1985 = scalar_lea.sflag [#allocation4], %s1984
          %s1986 = sand.u32 %s267, 1
          %s1987 = smul.addr %s1986, 128
          %s1988 = scalar_lea.vmem [#allocation13], %s1987
          %1989 = dma.done %s1985, 2048
        $region104: #{vae_forward.1} parent=99 // pred_fallthru
          _
        // Predicated region
        $region105: #{vae_forward.1} parent=99 // pred_check
          %p1990 = pneg %p308
        $region106: #{vae_forward.1} parent=99 // pred_check_branch
          %1992 = sbr.rel (%p1990) target = $region108
        $region107: #{vae_forward.1} parent=99 // pred_region
          %s1993 = sand.u32 %s39, 1
          %s1994 = scalar_lea.sflag [#allocation15], %s1993
          %s1995 = sand.u32 %s293, 1
          %s1996 = smul.addr %s1995, 128
          %s1997 = scalar_lea.vmem [#allocation14], %s1996
          %1998 = dma.done %s1994, 2048
        $region108: #{vae_forward.1} parent=99 // pred_fallthru
          _
        // Predicated region
        $region109: #{vae_forward.1} parent=99 // pred_check
          %p1999 = pneg %p334
        $region110: #{vae_forward.1} parent=99 // pred_check_branch
          %2001 = sbr.rel (%p1999) target = $region112
        $region111: #{vae_forward.1} parent=99 // pred_region
          %s2002 = sand.u32 %s39, 1
          %s2003 = scalar_lea.sflag [#allocation15], %s2002
          %s2004 = sand.u32 %s319, 1
          %s2005 = smul.addr %s2004, 128
          %s2006 = scalar_lea.vmem [#allocation16], %s2005
          %2007 = dma.done %s2003, 2048
        $region112: #{vae_forward.1} parent=99 // pred_fallthru
          _
      $region100: #{vae_forward.1} parent=5 // pred_fallthru
        _
    $region6: #{vae_forward.1} parent=1 // loop_footer
      %s37 = sadd.s32 1, %s33
    $region7: #{vae_forward.1} parent=1 // loop_footer_branch
      %32 = sbr.rel target = $region3
    $region8: #{vae_forward.1} parent=1 // loop_exit
      _
    %2008 = vsyncpa [#allocation3], 1
    %s2009 = scalar_lea.sflag [#allocation3], 1
    %2010 = vsyncpa %s2009, 1
    %2011 = vsyncpa [#allocation6], 1
    %s2012 = scalar_lea.sflag [#allocation6], 1
    %2013 = vsyncpa %s2012, 1
    %2014 = vsyncpa [#allocation9], 1
    %2015 = vsyncpa [#allocation12], 1
    %2016 = vsyncpa [#allocation4], 1
    %s2017 = scalar_lea.sflag [#allocation4], 1
    %2018 = vsyncpa %s2017, 1
    %2019 = vsyncpa [#allocation15], 1
    %s2020 = scalar_lea.sflag [#allocation15], 1
    %2021 = vsyncpa %s2020, 1

</llo_original>
